<compile_context>
chip_gen: v7x
topology: tpu7x:2x2x1
jax: 0.10.0
libtpu: 0.0.40
codegen_flags: <defaults>
</compile_context>

<pallas_src>
import functools
import math

import jax
import jax.numpy as jnp
from jax.experimental import pallas as pl
from jax.experimental.pallas import tpu as pltpu


# ----------------------------------------------------------------------------
# helpers
# ----------------------------------------------------------------------------
def _pad_dim(a, axis, target):
    pad = target - a.shape[axis]
    if pad == 0:
        return a
    widths = [(0, 0)] * a.ndim
    widths[axis] = (0, pad)
    return jnp.pad(a, widths)


# ----------------------------------------------------------------------------
# Pallas kernels
# ----------------------------------------------------------------------------
def linear_pallas(x, w, b, out_dtype=jnp.float32, tile_m=256, tile_n=512):
    """y = x @ w + b.  x: (M, K) ; w: (K, N) pre-transposed ; b: (N,) or (1, N).

    Always gridded over (M, N) tiles.  If a dimension exceeds its tile it is
    padded up to a tile multiple (zero rows/cols, sliced off afterwards) so the
    blocks stay (8,128)-legal and the weight stream pipelines block-by-block —
    the full (K, N) weight never has to sit in VMEM at once (v7x: 64 MiB).
    """
    M, K = x.shape
    N = w.shape[1]
    bm = M if M <= tile_m else tile_m          # full dim or 8-divisible tile
    bn = N if N <= tile_n else tile_n          # full dim or 128-divisible tile
    Mp = pl.cdiv(M, bm) * bm
    Np = pl.cdiv(N, bn) * bn

    x16 = _pad_dim(x.astype(jnp.bfloat16), 0, Mp)
    w16 = _pad_dim(w.astype(jnp.bfloat16), 1, Np)
    b32 = _pad_dim(b.reshape(1, N).astype(jnp.float32), 1, Np)

    def kernel(x_ref, w_ref, b_ref, o_ref):
        o_ref[...] = (jnp.dot(x_ref[...], w_ref[...],
                              preferred_element_type=jnp.float32)
                      + b_ref[...]).astype(o_ref.dtype)

    out = pl.pallas_call(
        kernel,
        out_shape=jax.ShapeDtypeStruct((Mp, Np), out_dtype),
        grid=(Mp // bm, Np // bn),
        in_specs=[
            pl.BlockSpec((bm, K), lambda i, j: (i, 0)),
            pl.BlockSpec((K, bn), lambda i, j: (0, j)),
            pl.BlockSpec((1, bn), lambda i, j: (0, j)),
        ],
        out_specs=pl.BlockSpec((bm, bn), lambda i, j: (i, j)),
        compiler_params=pltpu.CompilerParams(
            dimension_semantics=("parallel", "parallel")),
    )(x16, w16, b32)

    if (Mp, Np) != (M, N):
        out = out[:M, :N]
    return out


def ffn_ln_pallas(x, w1, b1, w2, b2, gamma, beta, eps=1e-5, tile_m=256):
    """Fused  LayerNorm(x + lin2(relu(lin1(x))))  — gridded over row blocks.

    x: (M, E) f32; w1: (E, FF) bf16; w2: (FF, E) bf16; biases/norm params f32.
    Weights stay resident (constant index_maps); only the (tile_m, FF) relu
    intermediate is live per grid step and the activation DMA is pipelined.
    """
    M, E = x.shape
    FF = w1.shape[1]
    bm = M if M <= tile_m else tile_m
    Mp = pl.cdiv(M, bm) * bm
    x32 = _pad_dim(x.astype(jnp.float32), 0, Mp)

    def kernel(x_ref, w1_ref, b1_ref, w2_ref, b2_ref, g_ref, bt_ref, o_ref):
        xb = x_ref[...]
        h = jnp.dot(xb.astype(jnp.bfloat16), w1_ref[...],
                    preferred_element_type=jnp.float32) + b1_ref[...]
        h = jnp.maximum(h, 0.0)
        y = jnp.dot(h.astype(jnp.bfloat16), w2_ref[...],
                    preferred_element_type=jnp.float32) + b2_ref[...]
        xx = xb + y
        mu = jnp.mean(xx, axis=-1, keepdims=True)
        xc = xx - mu
        var = jnp.mean(xc * xc, axis=-1, keepdims=True)
        o_ref[...] = xc * jax.lax.rsqrt(var + eps) * g_ref[...] + bt_ref[...]

    out = pl.pallas_call(
        kernel,
        out_shape=jax.ShapeDtypeStruct((Mp, E), jnp.float32),
        grid=(Mp // bm,),
        in_specs=[
            pl.BlockSpec((bm, E), lambda i: (i, 0)),
            pl.BlockSpec((E, FF), lambda i: (0, 0)),
            pl.BlockSpec((1, FF), lambda i: (0, 0)),
            pl.BlockSpec((FF, E), lambda i: (0, 0)),
            pl.BlockSpec((1, E), lambda i: (0, 0)),
            pl.BlockSpec((1, E), lambda i: (0, 0)),
            pl.BlockSpec((1, E), lambda i: (0, 0)),
        ],
        out_specs=pl.BlockSpec((bm, E), lambda i: (i, 0)),
        compiler_params=pltpu.CompilerParams(
            dimension_semantics=("parallel",)),
    )(x32,
      w1.astype(jnp.bfloat16), b1.reshape(1, FF).astype(jnp.float32),
      w2.astype(jnp.bfloat16), b2.reshape(1, E).astype(jnp.float32),
      gamma.reshape(1, E).astype(jnp.float32),
      beta.reshape(1, E).astype(jnp.float32))
    return out[:M] if Mp != M else out


def _mha_core(qq, kk, vv, mrow, wo, n_heads, scale):
    """Per-head softmax attention on (S, E) bf16 q/k/v + single out-projection.

    mrow: (1, S) f32 additive key-padding mask.  The mask broadcast is hoisted
    out of the head loop; head outputs are concatenated once so the final
    out-projection is a single K=E matmul (MXU-friendly) instead of n_heads
    K=dh matmuls.
    """
    S, E = qq.shape
    dh = E // n_heads
    mask2d = jnp.broadcast_to(mrow, (S, S))            # hoisted, emitted once
    heads = []
    for h in range(n_heads):                           # small static unroll
        sl = slice(h * dh, (h + 1) * dh)
        s = jax.lax.dot_general(
            qq[:, sl], kk[:, sl], (((1,), (1,)), ((), ())),
            preferred_element_type=jnp.float32) * scale
        s = s + mask2d
        s = s - jnp.max(s, axis=-1, keepdims=True)
        p = jnp.exp(s)
        p = p * pl.reciprocal(jnp.sum(p, axis=-1, keepdims=True), approx=True)
        heads.append(jnp.dot(p.astype(jnp.bfloat16), vv[:, sl],
                             preferred_element_type=jnp.float32))
    attn = jnp.concatenate(heads, axis=-1)             # (S, E) f32
    return jnp.dot(attn.astype(jnp.bfloat16), wo,
                   preferred_element_type=jnp.float32)


def self_attn_block_pallas(x, add_mask, w_qkv, b_qkv, w_out, b_out,
                           gamma, beta, n_heads, eps=1e-5):
    """Fused: QKV projection + MHA + out-proj + residual + LayerNorm.

    x: (B, S, E) f32; add_mask: (B, 1, S) f32 additive key-padding mask;
    w_qkv: (E, 3E) bf16 pre-transposed; w_out: (E, E) bf16.
    Grid over batch ("parallel").  The QKV activation never leaves VMEM.
    """
    B, S, E = x.shape
    dh = E // n_heads
    scale = 1.0 / math.sqrt(dh)

    def kernel(x_ref, m_ref, wqkv_ref, bqkv_ref, wo_ref, bo_ref,
               g_ref, bt_ref, o_ref):
        x32 = x_ref[0]                                  # (S, E) f32
        qkv = jnp.dot(x32.astype(jnp.bfloat16), wqkv_ref[...],
                      preferred_element_type=jnp.float32) + bqkv_ref[...]
        qkv16 = qkv.astype(jnp.bfloat16)
        attn = _mha_core(qkv16[:, :E], qkv16[:, E:2 * E], qkv16[:, 2 * E:],
                         m_ref[0], wo_ref[...], n_heads, scale)
        xx = x32 + attn + bo_ref[...]
        mu = jnp.mean(xx, axis=-1, keepdims=True)
        xc = xx - mu
        var = jnp.mean(xc * xc, axis=-1, keepdims=True)
        o_ref[0] = xc * jax.lax.rsqrt(var + eps) * g_ref[...] + bt_ref[...]

    return pl.pallas_call(
        kernel,
        out_shape=jax.ShapeDtypeStruct((B, S, E), jnp.float32),
        grid=(B,),
        in_specs=[
            pl.BlockSpec((1, S, E), lambda b: (b, 0, 0)),
            pl.BlockSpec((1, 1, S), lambda b: (b, 0, 0)),
            pl.BlockSpec((E, 3 * E), lambda b: (0, 0)),
            pl.BlockSpec((1, 3 * E), lambda b: (0, 0)),
            pl.BlockSpec((E, E), lambda b: (0, 0)),
            pl.BlockSpec((1, E), lambda b: (0, 0)),
            pl.BlockSpec((1, E), lambda b: (0, 0)),
            pl.BlockSpec((1, E), lambda b: (0, 0)),
        ],
        out_specs=pl.BlockSpec((1, S, E), lambda b: (b, 0, 0)),
        compiler_params=pltpu.CompilerParams(
            dimension_semantics=("parallel",)),
    )(x.astype(jnp.float32), add_mask.astype(jnp.float32),
      w_qkv.astype(jnp.bfloat16),
      b_qkv.reshape(1, 3 * E).astype(jnp.float32),
      w_out.astype(jnp.bfloat16), b_out.reshape(1, E).astype(jnp.float32),
      gamma.reshape(1, E).astype(jnp.float32),
      beta.reshape(1, E).astype(jnp.float32))


def cross_attn_block_pallas(x, mem_kv, add_mask, w_q, b_q, w_out, b_out,
                            gamma, beta, n_heads, eps=1e-5):
    """Fused: Q projection + cross MHA + out-proj + residual + LayerNorm.

    mem_kv: (B, S, 2E) bf16 precomputed K|V projection of the encoder memory
    (loop-invariant, projected once per decoder layer outside the greedy loop).
    """
    B, S, E = x.shape
    dh = E // n_heads
    scale = 1.0 / math.sqrt(dh)

    def kernel(x_ref, kv_ref, m_ref, wq_ref, bq_ref, wo_ref, bo_ref,
               g_ref, bt_ref, o_ref):
        x32 = x_ref[0]                                  # (S, E)  f32
        q = (jnp.dot(x32.astype(jnp.bfloat16), wq_ref[...],
                     preferred_element_type=jnp.float32)
             + bq_ref[...]).astype(jnp.bfloat16)
        kv16 = kv_ref[0]                                # (S, 2E) bf16
        attn = _mha_core(q, kv16[:, :E], kv16[:, E:],
                         m_ref[0], wo_ref[...], n_heads, scale)
        xx = x32 + attn + bo_ref[...]
        mu = jnp.mean(xx, axis=-1, keepdims=True)
        xc = xx - mu
        var = jnp.mean(xc * xc, axis=-1, keepdims=True)
        o_ref[0] = xc * jax.lax.rsqrt(var + eps) * g_ref[...] + bt_ref[...]

    return pl.pallas_call(
        kernel,
        out_shape=jax.ShapeDtypeStruct((B, S, E), jnp.float32),
        grid=(B,),
        in_specs=[
            pl.BlockSpec((1, S, E), lambda b: (b, 0, 0)),
            pl.BlockSpec((1, S, 2 * E), lambda b: (b, 0, 0)),
            pl.BlockSpec((1, 1, S), lambda b: (b, 0, 0)),
            pl.BlockSpec((E, E), lambda b: (0, 0)),
            pl.BlockSpec((1, E), lambda b: (0, 0)),
            pl.BlockSpec((E, E), lambda b: (0, 0)),
            pl.BlockSpec((1, E), lambda b: (0, 0)),
            pl.BlockSpec((1, E), lambda b: (0, 0)),
            pl.BlockSpec((1, E), lambda b: (0, 0)),
        ],
        out_specs=pl.BlockSpec((1, S, E), lambda b: (b, 0, 0)),
        compiler_params=pltpu.CompilerParams(
            dimension_semantics=("parallel",)),
    )(x.astype(jnp.float32), mem_kv.astype(jnp.bfloat16),
      add_mask.astype(jnp.float32),
      w_q.astype(jnp.bfloat16), b_q.reshape(1, E).astype(jnp.float32),
      w_out.astype(jnp.bfloat16), b_out.reshape(1, E).astype(jnp.float32),
      gamma.reshape(1, E).astype(jnp.float32),
      beta.reshape(1, E).astype(jnp.float32))


# ----------------------------------------------------------------------------
# Transformer building blocks (glue in JAX, compute in Pallas kernels above)
# ----------------------------------------------------------------------------
def encoder_layer(x, p, add_mask, n_heads):
    """nn.TransformerEncoderLayer (post-norm, relu, eval mode). x: (B, S, E)."""
    B, S, E = x.shape
    sa = p["self_attn"]
    x = self_attn_block_pallas(x, add_mask, sa["w_qkv"], sa["b_qkv"],
                               sa["w_out"], sa["b_out"],
                               p["norm1_w"], p["norm1_b"], n_heads)
    f = p["ffn"]
    x = ffn_ln_pallas(x.reshape(B * S, E), f["w1"], f["b1"], f["w2"], f["b2"],
                      p["norm2_w"], p["norm2_b"]).reshape(B, S, E)
    return x


def decoder_layer(x, mem_kv, p, tgt_add_mask, mem_add_mask, n_heads):
    """nn.TransformerDecoderLayer (post-norm, relu, eval mode, no tgt_mask)."""
    B, S, E = x.shape
    sa = p["self_attn"]
    x = self_attn_block_pallas(x, tgt_add_mask, sa["w_qkv"], sa["b_qkv"],
                               sa["w_out"], sa["b_out"],
                               p["norm1_w"], p["norm1_b"], n_heads)
    ca = p["cross_attn"]
    x = cross_attn_block_pallas(x, mem_kv, mem_add_mask, ca["w_q"], ca["b_q"],
                                ca["w_out"], ca["b_out"],
                                p["norm2_w"], p["norm2_b"], n_heads)
    f = p["ffn"]
    x = ffn_ln_pallas(x.reshape(B * S, E), f["w1"], f["b1"], f["w2"], f["b2"],
                      p["norm3_w"], p["norm3_b"]).reshape(B, S, E)
    return x


def encode_and_kv(params, src_tokens, src_add_mask, n_heads):
    """Run the encoder once and precompute per-decoder-layer cross-attn K/V."""
    B, S = src_tokens.shape
    E = params["src_emb"].shape[1]
    x = (jnp.take(params["src_emb"], src_tokens, axis=0) * math.sqrt(E)
         + params["pe"][None, :S, :])
    for lp in params["enc_layers"]:
        x = encoder_layer(x, lp, src_add_mask, n_heads)
    memory_flat = x.reshape(B * S, E)
    cross_kv = tuple(
        linear_pallas(memory_flat, lp["cross_attn"]["w_kv"],
                      lp["cross_attn"]["b_kv"],
                      out_dtype=jnp.bfloat16).reshape(B, S, 2 * E)
        for lp in params["dec_layers"])
    return cross_kv


def decode_step(params, cross_kv, trg_tokens, src_add_mask, trg_add_mask,
                n_heads):
    """One full decoder pass + vocab projection. Returns logits (B, S, V)."""
    B, S = trg_tokens.shape
    E = params["trg_emb"].shape[1]
    y = (jnp.take(params["trg_emb"], trg_tokens, axis=0) * math.sqrt(E)
         + params["pe"][None, :S, :])
    for lp, kv in zip(params["dec_layers"], cross_kv):
        y = decoder_layer(y, kv, lp, trg_add_mask, src_add_mask, n_heads)
    out = linear_pallas(y.reshape(B * S, E), params["dec_w"], params["dec_b"])
    return out.reshape(B, S, -1)


# ----------------------------------------------------------------------------
# Greedy decode — whole loop runs on-device inside one jit (lax.fori_loop)
# ----------------------------------------------------------------------------
@functools.partial(jax.jit, static_argnames=("n_heads", "sos", "eos"))
def _generate_jit(params, src_bf, src_lens, n_heads, sos, eos):
    B, S = src_bf.shape
    pos = jnp.arange(S)[None, :]
    src_pad = pos >= src_lens[:, None]                      # True = pad
    src_add_mask = jnp.where(src_pad, -1e30, 0.0).astype(jnp.float32)[:, None, :]

    # Encoder (and cross-attention K/V) hoisted out of the greedy loop —
    # it only depends on src / src_lens, identical to recomputing per step.
    cross_kv = encode_and_kv(params, src_bf, src_add_mask, n_heads)

    trg = jnp.zeros((S, B), jnp.int32).at[0, :].set(sos)
    trg_lens = jnp.ones((B,), jnp.int32)
    is_finished = jnp.zeros((B,), bool)

    def body(idx, carry):
        trg, trg_lens, is_finished = carry
        # Faithful to the torch reference: trg_lens only advances on EOS, so
        # the target key-padding mask stays mostly "position 0 only".
        trg_pad = pos >= trg_lens[:, None]
        trg_add_mask = jnp.where(trg_pad, -1e30,
                                 0.0).astype(jnp.float32)[:, None, :]
        out = decode_step(params, cross_kv, trg.T, src_add_mask, trg_add_mask,
                          n_heads)
        logits = jax.lax.dynamic_index_in_dim(out, idx, axis=1,
                                              keepdims=False)   # (B, V)
        pred = jnp.argmax(logits, axis=-1).astype(jnp.int32)
        finished_now = pred == eos
        trg_lens = jnp.where(finished_now, idx + 1, trg_lens)
        is_finished = is_finished | finished_now
        cur_row = jax.lax.dynamic_index_in_dim(trg, idx, axis=0,
                                               keepdims=False)
        new_row = jnp.where(is_finished, cur_row, pred)
        trg = jax.lax.dynamic_update_index_in_dim(trg, new_row, idx, axis=0)
        return trg, trg_lens, is_finished

    trg, trg_lens, is_finished = jax.lax.fori_loop(
        1, S - 1, body, (trg, trg_lens, is_finished))

    trg = trg.at[S - 1].set(jnp.where(is_finished, trg[S - 1], eos))
    trg_lens = jnp.where(is_finished, trg_lens, S)
    return trg, trg_lens


def generator_forward(params, src, src_lens, n_heads, sos=1, eos=2):
    """Generator.forward.  src: (S, B) int tokens (seq-first, like torch).

    Returns (trg (S, B) int32, trg_lens (B,) int32).
    """
    src_bf = src.T.astype(jnp.int32)                        # (B, S)
    return _generate_jit(params, src_bf, src_lens.astype(jnp.int32),
                         n_heads=n_heads, sos=sos, eos=eos)


# ----------------------------------------------------------------------------
# Deterministic parameter / buffer construction (pre-transposed, bf16 weights)
# ----------------------------------------------------------------------------
def make_positional_encoding(max_len, E):
    pos = jnp.arange(max_len, dtype=jnp.float32)[:, None]
    norm = jnp.exp(jnp.arange(0, E, 2, dtype=jnp.float32)
                   * (-math.log(10000.0) / E))
    pe = jnp.zeros((max_len, E), jnp.float32)
    pe = pe.at[:, 0::2].set(jnp.sin(pos * norm))
    pe = pe.at[:, 1::2].set(jnp.cos(pos * norm))
    return pe                                               # (max_len, E)


def init_params(key, V_in, V_out, E, H, FF, L, pe_len):
    keys = iter(jax.random.split(key, 512))

    def u(shape, a, dtype=jnp.float32):
        return jax.random.uniform(next(keys), shape, jnp.float32, -a, a).astype(dtype)

    s_e = 1.0 / math.sqrt(E)
    s_f = 1.0 / math.sqrt(FF)

    def self_attn():
        return {
            "w_qkv": u((E, 3 * E), s_e, jnp.bfloat16),   # pre-transposed (K, N)
            "b_qkv": jnp.zeros((1, 3 * E), jnp.float32),
            "w_out": u((E, E), s_e, jnp.bfloat16),
            "b_out": jnp.zeros((1, E), jnp.float32),
        }

    def cross_attn():
        return {
            "w_q": u((E, E), s_e, jnp.bfloat16),
            "b_q": jnp.zeros((1, E), jnp.float32),
            "w_kv": u((E, 2 * E), s_e, jnp.bfloat16),
            "b_kv": jnp.zeros((1, 2 * E), jnp.float32),
            "w_out": u((E, E), s_e, jnp.bfloat16),
            "b_out": jnp.zeros((1, E), jnp.float32),
        }

    def ffn():
        return {
            "w1": u((E, FF), s_e, jnp.bfloat16),
            "b1": u((1, FF), s_e),
            "w2": u((FF, E), s_f, jnp.bfloat16),
            "b2": u((1, E), s_f),
        }

    def norms(n):
        d = {}
        for i in range(1, n + 1):
            d[f"norm{i}_w"] = jnp.ones((1, E), jnp.float32)
            d[f"norm{i}_b"] = jnp.zeros((1, E), jnp.float32)
        return d

    enc_layers = tuple(dict(self_attn=self_attn(), ffn=ffn(), **norms(2))
                       for _ in range(L))
    dec_layers = tuple(dict(self_attn=self_attn(), cross_attn=cross_attn(),
                            ffn=ffn(), **norms(3))
                       for _ in range(L))

    return {
        "src_emb": u((V_in, E), 0.1),          # init_weights: uniform(-0.1, 0.1)
        "trg_emb": u((V_out, E), 0.1),
        "dec_w": u((E, V_out), 0.1, jnp.bfloat16),   # trg_decoder, pre-transposed
        "dec_b": jnp.zeros((1, V_out), jnp.float32),
        "enc_layers": enc_layers,
        "dec_layers": dec_layers,
        "pe": make_positional_encoding(pe_len, E),
    }


# ----------------------------------------------------------------------------
if __name__ == "__main__":
    # Small shapes consistent with the module's forward.
    S, B = 8, 2            # max_len (seq) x batch, src is (S, B) of token ids
    V_IN, V_OUT = 16, 16   # vocab sizes
    E, H, FF, L = 32, 2, 64, 2

    key = jax.random.PRNGKey(0)
    k_params, k_src = jax.random.split(key)

    params = init_params(k_params, V_IN, V_OUT, E, H, FF, L, pe_len=64)

    src = jax.random.randint(k_src, (S, B), 3, V_IN, dtype=jnp.int32)
    src_lens = jnp.array([S, 5], dtype=jnp.int32)

    trg, trg_lens = generator_forward(params, src, src_lens, n_heads=H,
                                      sos=1, eos=2)
    jax.block_until_ready((trg, trg_lens))
    print("KERNEL_OK")
</pallas_src>

<mosaic_0001>
module attributes {stable_mosaic.version = 11 : i64} {
  func.func @kernel(%arg0: i32, %arg1: memref<1x8x32xf32, #tpu.memory_space<vmem>>, %arg2: memref<1x1x8xf32, #tpu.memory_space<vmem>>, %arg3: memref<32x96xbf16, #tpu.memory_space<vmem>>, %arg4: memref<1x96xf32, #tpu.memory_space<vmem>>, %arg5: memref<32x32xbf16, #tpu.memory_space<vmem>>, %arg6: memref<1x32xf32, #tpu.memory_space<vmem>>, %arg7: memref<1x32xf32, #tpu.memory_space<vmem>>, %arg8: memref<1x32xf32, #tpu.memory_space<vmem>>, %arg9: memref<1x8x32xf32, #tpu.memory_space<vmem>>) attributes {dimension_semantics = [#tpu.dimension_semantics<parallel>], iteration_bounds = array<i64: 2>, scalar_prefetch = 0 : i64, scratch_operands = 0 : i64, tpu.core_type = #tpu.core_type<tc>, window_params = [{transform_indices = @transform_0, window_bounds = array<i64: 1, 8, 32>}, {transform_indices = @transform_1, window_bounds = array<i64: 1, 1, 8>}, {pipeline_mode = #tpu.pipeline_mode<synchronous>, transform_indices = @transform_2, window_bounds = array<i64: 32, 96>}, {pipeline_mode = #tpu.pipeline_mode<synchronous>, transform_indices = @transform_3, window_bounds = array<i64: 1, 96>}, {pipeline_mode = #tpu.pipeline_mode<synchronous>, transform_indices = @transform_4, window_bounds = array<i64: 32, 32>}, {pipeline_mode = #tpu.pipeline_mode<synchronous>, transform_indices = @transform_5, window_bounds = array<i64: 1, 32>}, {pipeline_mode = #tpu.pipeline_mode<synchronous>, transform_indices = @transform_6, window_bounds = array<i64: 1, 32>}, {pipeline_mode = #tpu.pipeline_mode<synchronous>, transform_indices = @transform_7, window_bounds = array<i64: 1, 32>}, {transform_indices = @transform_8, window_bounds = array<i64: 1, 8, 32>}]} {
    %c0 = arith.constant 0 : index
    %c0_0 = arith.constant 0 : index
    %c0_1 = arith.constant 0 : index
    %0 = vector.load %arg1[%c0, %c0_0, %c0_1] : memref<1x8x32xf32, #tpu.memory_space<vmem>>, vector<1x8x32xf32>
    %1 = vector.shape_cast %0 : vector<1x8x32xf32> to vector<8x32xf32>
    %2 = arith.truncf %1 : vector<8x32xf32> to vector<8x32xbf16>
    %c0_2 = arith.constant 0 : index
    %c0_3 = arith.constant 0 : index
    %3 = vector.load %arg3[%c0_2, %c0_3] : memref<32x96xbf16, #tpu.memory_space<vmem>>, vector<32x96xbf16>
    %cst = arith.constant dense<0.000000e+00> : vector<8x96xf32>
    %4 = tpu.matmul %2, %3, %cst {dimension_numbers = #tpu.dot_dimension_numbers<[1], [0], [0], [1], [0, 0, 1, 1], [], []>} : vector<8x32xbf16>, vector<32x96xbf16>, vector<8x96xf32> -> vector<8x96xf32>
    %c0_4 = arith.constant 0 : index
    %c0_5 = arith.constant 0 : index
    %5 = vector.load %arg4[%c0_4, %c0_5] : memref<1x96xf32, #tpu.memory_space<vmem>>, vector<1x96xf32>
    %6 = vector.broadcast %5 : vector<1x96xf32> to vector<8x96xf32>
    %7 = arith.addf %4, %6 : vector<8x96xf32>
    %8 = arith.truncf %7 : vector<8x96xf32> to vector<8x96xbf16>
    %9 = vector.extract_strided_slice %8 {offsets = [0, 0], sizes = [8, 32], strides = [1, 1]} : vector<8x96xbf16> to vector<8x32xbf16>
    %10 = vector.extract_strided_slice %8 {offsets = [0, 32], sizes = [8, 32], strides = [1, 1]} : vector<8x96xbf16> to vector<8x32xbf16>
    %11 = vector.extract_strided_slice %8 {offsets = [0, 64], sizes = [8, 32], strides = [1, 1]} : vector<8x96xbf16> to vector<8x32xbf16>
    %c0_6 = arith.constant 0 : index
    %c0_7 = arith.constant 0 : index
    %c0_8 = arith.constant 0 : index
    %12 = vector.load %arg2[%c0_6, %c0_7, %c0_8] : memref<1x1x8xf32, #tpu.memory_space<vmem>>, vector<1x1x8xf32>
    %13 = vector.shape_cast %12 : vector<1x1x8xf32> to vector<1x8xf32>
    %c0_9 = arith.constant 0 : index
    %c0_10 = arith.constant 0 : index
    %14 = vector.load %arg5[%c0_9, %c0_10] : memref<32x32xbf16, #tpu.memory_space<vmem>>, vector<32x32xbf16>
    %15 = vector.shape_cast %13 : vector<1x8xf32> to vector<1x8xf32>
    %16 = vector.broadcast %15 : vector<1x8xf32> to vector<8x8xf32>
    %17 = vector.extract_strided_slice %9 {offsets = [0, 0], sizes = [8, 16], strides = [1, 1]} : vector<8x32xbf16> to vector<8x16xbf16>
    %18 = vector.extract_strided_slice %10 {offsets = [0, 0], sizes = [8, 16], strides = [1, 1]} : vector<8x32xbf16> to vector<8x16xbf16>
    %cst_11 = arith.constant dense<0.000000e+00> : vector<8x8xf32>
    %19 = tpu.matmul %17, %18, %cst_11 {dimension_numbers = #tpu.dot_dimension_numbers<[1], [1], [0], [0], [0, 0, 1, 0], [], []>} : vector<8x16xbf16>, vector<8x16xbf16>, vector<8x8xf32> -> vector<8x8xf32>
    %cst_12 = arith.constant 2.500000e-01 : f32
    %20 = vector.broadcast %cst_12 : f32 to vector<8x8xf32>
    %21 = arith.mulf %19, %20 : vector<8x8xf32>
    %22 = arith.addf %21, %16 : vector<8x8xf32>
    %cst_13 = arith.constant dense<0xFF800000> : vector<8xf32>
    %23 = vector.multi_reduction <maximumf>, %22, %cst_13 [1] : vector<8x8xf32> to vector<8xf32>
    %24 = vector.shape_cast %23 : vector<8xf32> to vector<8x1xf32>
    %25 = vector.broadcast %24 : vector<8x1xf32> to vector<8x8xf32>
    %26 = arith.subf %22, %25 : vector<8x8xf32>
    %27 = math.exp %26 : vector<8x8xf32>
    %cst_14 = arith.constant dense<0.000000e+00> : vector<8xf32>
    %28 = vector.multi_reduction <add>, %27, %cst_14 [1] : vector<8x8xf32> to vector<8xf32>
    %29 = vector.shape_cast %28 : vector<8xf32> to vector<8x1xf32>
    %30 = tpu.reciprocal %29 {approx = true} : vector<8x1xf32> -> vector<8x1xf32>
    %31 = vector.broadcast %30 : vector<8x1xf32> to vector<8x8xf32>
    %32 = arith.mulf %27, %31 : vector<8x8xf32>
    %33 = arith.truncf %32 : vector<8x8xf32> to vector<8x8xbf16>
    %34 = vector.extract_strided_slice %11 {offsets = [0, 0], sizes = [8, 16], strides = [1, 1]} : vector<8x32xbf16> to vector<8x16xbf16>
    %cst_15 = arith.constant dense<0.000000e+00> : vector<8x16xf32>
    %35 = tpu.matmul %33, %34, %cst_15 {dimension_numbers = #tpu.dot_dimension_numbers<[1], [0], [0], [1], [0, 0, 1, 1], [], []>} : vector<8x8xbf16>, vector<8x16xbf16>, vector<8x16xf32> -> vector<8x16xf32>
    %36 = vector.extract_strided_slice %9 {offsets = [0, 16], sizes = [8, 16], strides = [1, 1]} : vector<8x32xbf16> to vector<8x16xbf16>
    %37 = vector.extract_strided_slice %10 {offsets = [0, 16], sizes = [8, 16], strides = [1, 1]} : vector<8x32xbf16> to vector<8x16xbf16>
    %cst_16 = arith.constant dense<0.000000e+00> : vector<8x8xf32>
    %38 = tpu.matmul %36, %37, %cst_16 {dimension_numbers = #tpu.dot_dimension_numbers<[1], [1], [0], [0], [0, 0, 1, 0], [], []>} : vector<8x16xbf16>, vector<8x16xbf16>, vector<8x8xf32> -> vector<8x8xf32>
    %cst_17 = arith.constant 2.500000e-01 : f32
    %39 = vector.broadcast %cst_17 : f32 to vector<8x8xf32>
    %40 = arith.mulf %38, %39 : vector<8x8xf32>
    %41 = arith.addf %40, %16 : vector<8x8xf32>
    %cst_18 = arith.constant dense<0xFF800000> : vector<8xf32>
    %42 = vector.multi_reduction <maximumf>, %41, %cst_18 [1] : vector<8x8xf32> to vector<8xf32>
    %43 = vector.shape_cast %42 : vector<8xf32> to vector<8x1xf32>
    %44 = vector.broadcast %43 : vector<8x1xf32> to vector<8x8xf32>
    %45 = arith.subf %41, %44 : vector<8x8xf32>
    %46 = math.exp %45 : vector<8x8xf32>
    %cst_19 = arith.constant dense<0.000000e+00> : vector<8xf32>
    %47 = vector.multi_reduction <add>, %46, %cst_19 [1] : vector<8x8xf32> to vector<8xf32>
    %48 = vector.shape_cast %47 : vector<8xf32> to vector<8x1xf32>
    %49 = tpu.reciprocal %48 {approx = true} : vector<8x1xf32> -> vector<8x1xf32>
    %50 = vector.broadcast %49 : vector<8x1xf32> to vector<8x8xf32>
    %51 = arith.mulf %46, %50 : vector<8x8xf32>
    %52 = arith.truncf %51 : vector<8x8xf32> to vector<8x8xbf16>
    %53 = vector.extract_strided_slice %11 {offsets = [0, 16], sizes = [8, 16], strides = [1, 1]} : vector<8x32xbf16> to vector<8x16xbf16>
    %cst_20 = arith.constant dense<0.000000e+00> : vector<8x16xf32>
    %54 = tpu.matmul %52, %53, %cst_20 {dimension_numbers = #tpu.dot_dimension_numbers<[1], [0], [0], [1], [0, 0, 1, 1], [], []>} : vector<8x8xbf16>, vector<8x16xbf16>, vector<8x16xf32> -> vector<8x16xf32>
    %55 = tpu.concatenate %35, %54 in 1 : vector<8x16xf32>, vector<8x16xf32> -> vector<8x32xf32>
    %56 = arith.truncf %55 : vector<8x32xf32> to vector<8x32xbf16>
    %cst_21 = arith.constant dense<0.000000e+00> : vector<8x32xf32>
    %57 = tpu.matmul %56, %14, %cst_21 {dimension_numbers = #tpu.dot_dimension_numbers<[1], [0], [0], [1], [0, 0, 1, 1], [], []>} : vector<8x32xbf16>, vector<32x32xbf16>, vector<8x32xf32> -> vector<8x32xf32>
    %58 = arith.addf %1, %57 : vector<8x32xf32>
    %c0_22 = arith.constant 0 : index
    %c0_23 = arith.constant 0 : index
    %59 = vector.load %arg6[%c0_22, %c0_23] : memref<1x32xf32, #tpu.memory_space<vmem>>, vector<1x32xf32>
    %60 = vector.broadcast %59 : vector<1x32xf32> to vector<8x32xf32>
    %61 = arith.addf %58, %60 : vector<8x32xf32>
    %cst_24 = arith.constant dense<0.000000e+00> : vector<8xf32>
    %62 = vector.multi_reduction <add>, %61, %cst_24 [1] : vector<8x32xf32> to vector<8xf32>
    %63 = vector.shape_cast %62 : vector<8xf32> to vector<8x1xf32>
    %cst_25 = arith.constant 3.200000e+01 : f32
    %64 = vector.broadcast %cst_25 : f32 to vector<8x1xf32>
    %65 = arith.divf %63, %64 : vector<8x1xf32>
    %66 = vector.broadcast %65 : vector<8x1xf32> to vector<8x32xf32>
    %67 = arith.subf %61, %66 : vector<8x32xf32>
    %68 = arith.mulf %67, %67 : vector<8x32xf32>
    %cst_26 = arith.constant dense<0.000000e+00> : vector<8xf32>
    %69 = vector.multi_reduction <add>, %68, %cst_26 [1] : vector<8x32xf32> to vector<8xf32>
    %70 = vector.shape_cast %69 : vector<8xf32> to vector<8x1xf32>
    %cst_27 = arith.constant 3.200000e+01 : f32
    %71 = vector.broadcast %cst_27 : f32 to vector<8x1xf32>
    %72 = arith.divf %70, %71 : vector<8x1xf32>
    %cst_28 = arith.constant 9.99999974E-6 : f32
    %73 = vector.broadcast %cst_28 : f32 to vector<8x1xf32>
    %74 = arith.addf %72, %73 : vector<8x1xf32>
    %75 = math.rsqrt %74 : vector<8x1xf32>
    %76 = vector.broadcast %75 : vector<8x1xf32> to vector<8x32xf32>
    %77 = arith.mulf %67, %76 : vector<8x32xf32>
    %c0_29 = arith.constant 0 : index
    %c0_30 = arith.constant 0 : index
    %78 = vector.load %arg7[%c0_29, %c0_30] : memref<1x32xf32, #tpu.memory_space<vmem>>, vector<1x32xf32>
    %79 = vector.broadcast %78 : vector<1x32xf32> to vector<8x32xf32>
    %80 = arith.mulf %77, %79 : vector<8x32xf32>
    %c0_31 = arith.constant 0 : index
    %c0_32 = arith.constant 0 : index
    %81 = vector.load %arg8[%c0_31, %c0_32] : memref<1x32xf32, #tpu.memory_space<vmem>>, vector<1x32xf32>
    %82 = vector.broadcast %81 : vector<1x32xf32> to vector<8x32xf32>
    %83 = arith.addf %80, %82 : vector<8x32xf32>
    %c0_33 = arith.constant 0 : index
    %c0_34 = arith.constant 0 : index
    %c0_35 = arith.constant 0 : index
    %84 = vector.load %arg9[%c0_33, %c0_34, %c0_35] : memref<1x8x32xf32, #tpu.memory_space<vmem>>, vector<1x8x32xf32>
    %85 = vector.shape_cast %84 : vector<1x8x32xf32> to vector<8x32xf32>
    %86 = vector.shape_cast %83 : vector<8x32xf32> to vector<1x8x32xf32>
    tpu.vector_store %arg9[%c0_33, %c0_34, %c0_35], %86 {strides = array<i32>} : memref<1x8x32xf32, #tpu.memory_space<vmem>>, vector<1x8x32xf32>,
    return
  }
  func.func @transform_0(%arg0: i32) -> (i32, i32, i32) {
    %c0_i32 = arith.constant 0 : i32
    %c0_i32_0 = arith.constant 0 : i32
    %c0_i32_1 = arith.constant 0 : i32
    return %arg0, %c0_i32, %c0_i32_0 : i32, i32, i32
  }
  func.func @transform_1(%arg0: i32) -> (i32, i32, i32) {
    %c0_i32 = arith.constant 0 : i32
    %c0_i32_0 = arith.constant 0 : i32
    %c0_i32_1 = arith.constant 0 : i32
    return %arg0, %c0_i32, %c0_i32_0 : i32, i32, i32
  }
  func.func @transform_2(%arg0: i32) -> (i32, i32) {
    %c0_i32 = arith.constant 0 : i32
    %c0_i32_0 = arith.constant 0 : i32
    %c0_i32_1 = arith.constant 0 : i32
    return %c0_i32, %c0_i32_0 : i32, i32
  }
  func.func @transform_3(%arg0: i32) -> (i32, i32) {
    %c0_i32 = arith.constant 0 : i32
    %c0_i32_0 = arith.constant 0 : i32
    %c0_i32_1 = arith.constant 0 : i32
    return %c0_i32, %c0_i32_0 : i32, i32
  }
  func.func @transform_4(%arg0: i32) -> (i32, i32) {
    %c0_i32 = arith.constant 0 : i32
    %c0_i32_0 = arith.constant 0 : i32
    %c0_i32_1 = arith.constant 0 : i32
    return %c0_i32, %c0_i32_0 : i32, i32
  }
  func.func @transform_5(%arg0: i32) -> (i32, i32) {
    %c0_i32 = arith.constant 0 : i32
    %c0_i32_0 = arith.constant 0 : i32
    %c0_i32_1 = arith.constant 0 : i32
    return %c0_i32, %c0_i32_0 : i32, i32
  }
  func.func @transform_6(%arg0: i32) -> (i32, i32) {
    %c0_i32 = arith.constant 0 : i32
    %c0_i32_0 = arith.constant 0 : i32
    %c0_i32_1 = arith.constant 0 : i32
    return %c0_i32, %c0_i32_0 : i32, i32
  }
  func.func @transform_7(%arg0: i32) -> (i32, i32) {
    %c0_i32 = arith.constant 0 : i32
    %c0_i32_0 = arith.constant 0 : i32
    %c0_i32_1 = arith.constant 0 : i32
    return %c0_i32, %c0_i32_0 : i32, i32
  }
  func.func @transform_8(%arg0: i32) -> (i32, i32, i32) {
    %c0_i32 = arith.constant 0 : i32
    %c0_i32_0 = arith.constant 0 : i32
    %c0_i32_1 = arith.constant 0 : i32
    return %arg0, %c0_i32, %c0_i32_0 : i32, i32, i32
  }
}

module attributes {stable_mosaic.version = 11 : i64} {
  func.func @kernel(%arg0: i32, %arg1: i32, %arg2: memref<16x32xbf16, #tpu.memory_space<vmem>>, %arg3: memref<32x64xbf16, #tpu.memory_space<vmem>>, %arg4: memref<1x64xf32, #tpu.memory_space<vmem>>, %arg5: memref<16x64xbf16, #tpu.memory_space<vmem>>) attributes {dimension_semantics = [#tpu.dimension_semantics<parallel>, #tpu.dimension_semantics<parallel>], iteration_bounds = array<i64: 1, 1>, scalar_prefetch = 0 : i64, scratch_operands = 0 : i64, tpu.core_type = #tpu.core_type<tc>, window_params = [{transform_indices = @transform_0, window_bounds = array<i64: 16, 32>}, {transform_indices = @transform_1, window_bounds = array<i64: 32, 64>}, {transform_indices = @transform_2, window_bounds = array<i64: 1, 64>}, {transform_indices = @transform_3, window_bounds = array<i64: 16, 64>}]} {
    %c0 = arith.constant 0 : index
    %c0_0 = arith.constant 0 : index
    %0 = vector.load %arg2[%c0, %c0_0] : memref<16x32xbf16, #tpu.memory_space<vmem>>, vector<16x32xbf16>
    %c0_1 = arith.constant 0 : index
    %c0_2 = arith.constant 0 : index
    %1 = vector.load %arg3[%c0_1, %c0_2] : memref<32x64xbf16, #tpu.memory_space<vmem>>, vector<32x64xbf16>
    %cst = arith.constant dense<0.000000e+00> : vector<16x64xf32>
    %2 = tpu.matmul %0, %1, %cst {dimension_numbers = #tpu.dot_dimension_numbers<[1], [0], [0], [1], [0, 0, 1, 1], [], []>} : vector<16x32xbf16>, vector<32x64xbf16>, vector<16x64xf32> -> vector<16x64xf32>
    %c0_3 = arith.constant 0 : index
    %c0_4 = arith.constant 0 : index
    %3 = vector.load %arg4[%c0_3, %c0_4] : memref<1x64xf32, #tpu.memory_space<vmem>>, vector<1x64xf32>
    %4 = vector.broadcast %3 : vector<1x64xf32> to vector<16x64xf32>
    %5 = arith.addf %2, %4 : vector<16x64xf32>
    %6 = arith.truncf %5 : vector<16x64xf32> to vector<16x64xbf16>
    %c0_5 = arith.constant 0 : index
    %c0_6 = arith.constant 0 : index
    %7 = vector.load %arg5[%c0_5, %c0_6] : memref<16x64xbf16, #tpu.memory_space<vmem>>, vector<16x64xbf16>
    tpu.vector_store %arg5[%c0_5, %c0_6], %6 {strides = array<i32>} : memref<16x64xbf16, #tpu.memory_space<vmem>>, vector<16x64xbf16>,
    return
  }
  func.func @transform_0(%arg0: i32, %arg1: i32) -> (i32, i32) {
    %c0_i32 = arith.constant 0 : i32
    %c0_i32_0 = arith.constant 0 : i32
    return %arg0, %c0_i32 : i32, i32
  }
  func.func @transform_1(%arg0: i32, %arg1: i32) -> (i32, i32) {
    %c0_i32 = arith.constant 0 : i32
    %c0_i32_0 = arith.constant 0 : i32
    return %c0_i32, %arg1 : i32, i32
  }
  func.func @transform_2(%arg0: i32, %arg1: i32) -> (i32, i32) {
    %c0_i32 = arith.constant 0 : i32
    %c0_i32_0 = arith.constant 0 : i32
    return %c0_i32, %arg1 : i32, i32
  }
  func.func @transform_3(%arg0: i32, %arg1: i32) -> (i32, i32) {
    %c0_i32 = arith.constant 0 : i32
    return %arg0, %arg1 : i32, i32
  }
}

module attributes {stable_mosaic.version = 11 : i64} {
  func.func @kernel(%arg0: i32, %arg1: memref<16x32xf32, #tpu.memory_space<vmem>>, %arg2: memref<32x64xbf16, #tpu.memory_space<vmem>>, %arg3: memref<1x64xf32, #tpu.memory_space<vmem>>, %arg4: memref<64x32xbf16, #tpu.memory_space<vmem>>, %arg5: memref<1x32xf32, #tpu.memory_space<vmem>>, %arg6: memref<1x32xf32, #tpu.memory_space<vmem>>, %arg7: memref<1x32xf32, #tpu.memory_space<vmem>>, %arg8: memref<16x32xf32, #tpu.memory_space<vmem>>) attributes {dimension_semantics = [#tpu.dimension_semantics<parallel>], iteration_bounds = array<i64: 1>, scalar_prefetch = 0 : i64, scratch_operands = 0 : i64, tpu.core_type = #tpu.core_type<tc>, window_params = [{transform_indices = @transform_0, window_bounds = array<i64: 16, 32>}, {pipeline_mode = #tpu.pipeline_mode<synchronous>, transform_indices = @transform_1, window_bounds = array<i64: 32, 64>}, {pipeline_mode = #tpu.pipeline_mode<synchronous>, transform_indices = @transform_2, window_bounds = array<i64: 1, 64>}, {pipeline_mode = #tpu.pipeline_mode<synchronous>, transform_indices = @transform_3, window_bounds = array<i64: 64, 32>}, {pipeline_mode = #tpu.pipeline_mode<synchronous>, transform_indices = @transform_4, window_bounds = array<i64: 1, 32>}, {pipeline_mode = #tpu.pipeline_mode<synchronous>, transform_indices = @transform_5, window_bounds = array<i64: 1, 32>}, {pipeline_mode = #tpu.pipeline_mode<synchronous>, transform_indices = @transform_6, window_bounds = array<i64: 1, 32>}, {transform_indices = @transform_7, window_bounds = array<i64: 16, 32>}]} {
    %c0 = arith.constant 0 : index
    %c0_0 = arith.constant 0 : index
    %0 = vector.load %arg1[%c0, %c0_0] : memref<16x32xf32, #tpu.memory_space<vmem>>, vector<16x32xf32>
    %1 = arith.truncf %0 : vector<16x32xf32> to vector<16x32xbf16>
    %c0_1 = arith.constant 0 : index
    %c0_2 = arith.constant 0 : index
    %2 = vector.load %arg2[%c0_1, %c0_2] : memref<32x64xbf16, #tpu.memory_space<vmem>>, vector<32x64xbf16>
    %cst = arith.constant dense<0.000000e+00> : vector<16x64xf32>
    %3 = tpu.matmul %1, %2, %cst {dimension_numbers = #tpu.dot_dimension_numbers<[1], [0], [0], [1], [0, 0, 1, 1], [], []>} : vector<16x32xbf16>, vector<32x64xbf16>, vector<16x64xf32> -> vector<16x64xf32>
    %c0_3 = arith.constant 0 : index
    %c0_4 = arith.constant 0 : index
    %4 = vector.load %arg3[%c0_3, %c0_4] : memref<1x64xf32, #tpu.memory_space<vmem>>, vector<1x64xf32>
    %5 = vector.broadcast %4 : vector<1x64xf32> to vector<16x64xf32>
    %6 = arith.addf %3, %5 : vector<16x64xf32>
    %cst_5 = arith.constant 0.000000e+00 : f32
    %7 = vector.broadcast %cst_5 : f32 to vector<16x64xf32>
    %8 = arith.maximumf %6, %7 : vector<16x64xf32>
    %9 = arith.truncf %8 : vector<16x64xf32> to vector<16x64xbf16>
    %c0_6 = arith.constant 0 : index
    %c0_7 = arith.constant 0 : index
    %10 = vector.load %arg4[%c0_6, %c0_7] : memref<64x32xbf16, #tpu.memory_space<vmem>>, vector<64x32xbf16>
    %cst_8 = arith.constant dense<0.000000e+00> : vector<16x32xf32>
    %11 = tpu.matmul %9, %10, %cst_8 {dimension_numbers = #tpu.dot_dimension_numbers<[1], [0], [0], [1], [0, 0, 1, 1], [], []>} : vector<16x64xbf16>, vector<64x32xbf16>, vector<16x32xf32> -> vector<16x32xf32>
    %c0_9 = arith.constant 0 : index
    %c0_10 = arith.constant 0 : index
    %12 = vector.load %arg5[%c0_9, %c0_10] : memref<1x32xf32, #tpu.memory_space<vmem>>, vector<1x32xf32>
    %13 = vector.broadcast %12 : vector<1x32xf32> to vector<16x32xf32>
    %14 = arith.addf %11, %13 : vector<16x32xf32>
    %15 = arith.addf %0, %14 : vector<16x32xf32>
    %cst_11 = arith.constant dense<0.000000e+00> : vector<16xf32>
    %16 = vector.multi_reduction <add>, %15, %cst_11 [1] : vector<16x32xf32> to vector<16xf32>
    %17 = vector.shape_cast %16 : vector<16xf32> to vector<16x1xf32>
    %cst_12 = arith.constant 3.200000e+01 : f32
    %18 = vector.broadcast %cst_12 : f32 to vector<16x1xf32>
    %19 = arith.divf %17, %18 : vector<16x1xf32>
    %20 = vector.broadcast %19 : vector<16x1xf32> to vector<16x32xf32>
    %21 = arith.subf %15, %20 : vector<16x32xf32>
    %22 = arith.mulf %21, %21 : vector<16x32xf32>
    %cst_13 = arith.constant dense<0.000000e+00> : vector<16xf32>
    %23 = vector.multi_reduction <add>, %22, %cst_13 [1] : vector<16x32xf32> to vector<16xf32>
    %24 = vector.shape_cast %23 : vector<16xf32> to vector<16x1xf32>
    %cst_14 = arith.constant 3.200000e+01 : f32
    %25 = vector.broadcast %cst_14 : f32 to vector<16x1xf32>
    %26 = arith.divf %24, %25 : vector<16x1xf32>
    %cst_15 = arith.constant 9.99999974E-6 : f32
    %27 = vector.broadcast %cst_15 : f32 to vector<16x1xf32>
    %28 = arith.addf %26, %27 : vector<16x1xf32>
    %29 = math.rsqrt %28 : vector<16x1xf32>
    %30 = vector.broadcast %29 : vector<16x1xf32> to vector<16x32xf32>
    %31 = arith.mulf %21, %30 : vector<16x32xf32>
    %c0_16 = arith.constant 0 : index
    %c0_17 = arith.constant 0 : index
    %32 = vector.load %arg6[%c0_16, %c0_17] : memref<1x32xf32, #tpu.memory_space<vmem>>, vector<1x32xf32>
    %33 = vector.broadcast %32 : vector<1x32xf32> to vector<16x32xf32>
    %34 = arith.mulf %31, %33 : vector<16x32xf32>
    %c0_18 = arith.constant 0 : index
    %c0_19 = arith.constant 0 : index
    %35 = vector.load %arg7[%c0_18, %c0_19] : memref<1x32xf32, #tpu.memory_space<vmem>>, vector<1x32xf32>
    %36 = vector.broadcast %35 : vector<1x32xf32> to vector<16x32xf32>
    %37 = arith.addf %34, %36 : vector<16x32xf32>
    %c0_20 = arith.constant 0 : index
    %c0_21 = arith.constant 0 : index
    %38 = vector.load %arg8[%c0_20, %c0_21] : memref<16x32xf32, #tpu.memory_space<vmem>>, vector<16x32xf32>
    tpu.vector_store %arg8[%c0_20, %c0_21], %37 {strides = array<i32>} : memref<16x32xf32, #tpu.memory_space<vmem>>, vector<16x32xf32>,
    return
  }
  func.func @transform_0(%arg0: i32) -> (i32, i32) {
    %c0_i32 = arith.constant 0 : i32
    %c0_i32_0 = arith.constant 0 : i32
    return %arg0, %c0_i32 : i32, i32
  }
  func.func @transform_1(%arg0: i32) -> (i32, i32) {
    %c0_i32 = arith.constant 0 : i32
    %c0_i32_0 = arith.constant 0 : i32
    %c0_i32_1 = arith.constant 0 : i32
    return %c0_i32, %c0_i32_0 : i32, i32
  }
  func.func @transform_2(%arg0: i32) -> (i32, i32) {
    %c0_i32 = arith.constant 0 : i32
    %c0_i32_0 = arith.constant 0 : i32
    %c0_i32_1 = arith.constant 0 : i32
    return %c0_i32, %c0_i32_0 : i32, i32
  }
  func.func @transform_3(%arg0: i32) -> (i32, i32) {
    %c0_i32 = arith.constant 0 : i32
    %c0_i32_0 = arith.constant 0 : i32
    %c0_i32_1 = arith.constant 0 : i32
    return %c0_i32, %c0_i32_0 : i32, i32
  }
  func.func @transform_4(%arg0: i32) -> (i32, i32) {
    %c0_i32 = arith.constant 0 : i32
    %c0_i32_0 = arith.constant 0 : i32
    %c0_i32_1 = arith.constant 0 : i32
    return %c0_i32, %c0_i32_0 : i32, i32
  }
  func.func @transform_5(%arg0: i32) -> (i32, i32) {
    %c0_i32 = arith.constant 0 : i32
    %c0_i32_0 = arith.constant 0 : i32
    %c0_i32_1 = arith.constant 0 : i32
    return %c0_i32, %c0_i32_0 : i32, i32
  }
  func.func @transform_6(%arg0: i32) -> (i32, i32) {
    %c0_i32 = arith.constant 0 : i32
    %c0_i32_0 = arith.constant 0 : i32
    %c0_i32_1 = arith.constant 0 : i32
    return %c0_i32, %c0_i32_0 : i32, i32
  }
  func.func @transform_7(%arg0: i32) -> (i32, i32) {
    %c0_i32 = arith.constant 0 : i32
    %c0_i32_0 = arith.constant 0 : i32
    return %arg0, %c0_i32 : i32, i32
  }
}

module attributes {stable_mosaic.version = 11 : i64} {
  func.func @kernel(%arg0: i32, %arg1: memref<1x8x32xf32, #tpu.memory_space<vmem>>, %arg2: memref<1x8x64xbf16, #tpu.memory_space<vmem>>, %arg3: memref<1x1x8xf32, #tpu.memory_space<vmem>>, %arg4: memref<32x32xbf16, #tpu.memory_space<vmem>>, %arg5: memref<1x32xf32, #tpu.memory_space<vmem>>, %arg6: memref<32x32xbf16, #tpu.memory_space<vmem>>, %arg7: memref<1x32xf32, #tpu.memory_space<vmem>>, %arg8: memref<1x32xf32, #tpu.memory_space<vmem>>, %arg9: memref<1x32xf32, #tpu.memory_space<vmem>>, %arg10: memref<1x8x32xf32, #tpu.memory_space<vmem>>) attributes {dimension_semantics = [#tpu.dimension_semantics<parallel>], iteration_bounds = array<i64: 2>, scalar_prefetch = 0 : i64, scratch_operands = 0 : i64, tpu.core_type = #tpu.core_type<tc>, window_params = [{transform_indices = @transform_0, window_bounds = array<i64: 1, 8, 32>}, {transform_indices = @transform_1, window_bounds = array<i64: 1, 8, 64>}, {transform_indices = @transform_2, window_bounds = array<i64: 1, 1, 8>}, {pipeline_mode = #tpu.pipeline_mode<synchronous>, transform_indices = @transform_3, window_bounds = array<i64: 32, 32>}, {pipeline_mode = #tpu.pipeline_mode<synchronous>, transform_indices = @transform_4, window_bounds = array<i64: 1, 32>}, {pipeline_mode = #tpu.pipeline_mode<synchronous>, transform_indices = @transform_5, window_bounds = array<i64: 32, 32>}, {pipeline_mode = #tpu.pipeline_mode<synchronous>, transform_indices = @transform_6, window_bounds = array<i64: 1, 32>}, {pipeline_mode = #tpu.pipeline_mode<synchronous>, transform_indices = @transform_7, window_bounds = array<i64: 1, 32>}, {pipeline_mode = #tpu.pipeline_mode<synchronous>, transform_indices = @transform_8, window_bounds = array<i64: 1, 32>}, {transform_indices = @transform_9, window_bounds = array<i64: 1, 8, 32>}]} {
    %c0 = arith.constant 0 : index
    %c0_0 = arith.constant 0 : index
    %c0_1 = arith.constant 0 : index
    %0 = vector.load %arg1[%c0, %c0_0, %c0_1] : memref<1x8x32xf32, #tpu.memory_space<vmem>>, vector<1x8x32xf32>
    %1 = vector.shape_cast %0 : vector<1x8x32xf32> to vector<8x32xf32>
    %2 = arith.truncf %1 : vector<8x32xf32> to vector<8x32xbf16>
    %c0_2 = arith.constant 0 : index
    %c0_3 = arith.constant 0 : index
    %3 = vector.load %arg4[%c0_2, %c0_3] : memref<32x32xbf16, #tpu.memory_space<vmem>>, vector<32x32xbf16>
    %cst = arith.constant dense<0.000000e+00> : vector<8x32xf32>
    %4 = tpu.matmul %2, %3, %cst {dimension_numbers = #tpu.dot_dimension_numbers<[1], [0], [0], [1], [0, 0, 1, 1], [], []>} : vector<8x32xbf16>, vector<32x32xbf16>, vector<8x32xf32> -> vector<8x32xf32>
    %c0_4 = arith.constant 0 : index
    %c0_5 = arith.constant 0 : index
    %5 = vector.load %arg5[%c0_4, %c0_5] : memref<1x32xf32, #tpu.memory_space<vmem>>, vector<1x32xf32>
    %6 = vector.broadcast %5 : vector<1x32xf32> to vector<8x32xf32>
    %7 = arith.addf %4, %6 : vector<8x32xf32>
    %8 = arith.truncf %7 : vector<8x32xf32> to vector<8x32xbf16>
    %c0_6 = arith.constant 0 : index
    %c0_7 = arith.constant 0 : index
    %c0_8 = arith.constant 0 : index
    %9 = vector.load %arg2[%c0_6, %c0_7, %c0_8] : memref<1x8x64xbf16, #tpu.memory_space<vmem>>, vector<1x8x64xbf16>
    %10 = vector.shape_cast %9 : vector<1x8x64xbf16> to vector<8x64xbf16>
    %11 = vector.extract_strided_slice %10 {offsets = [0, 0], sizes = [8, 32], strides = [1, 1]} : vector<8x64xbf16> to vector<8x32xbf16>
    %12 = vector.extract_strided_slice %10 {offsets = [0, 32], sizes = [8, 32], strides = [1, 1]} : vector<8x64xbf16> to vector<8x32xbf16>
    %c0_9 = arith.constant 0 : index
    %c0_10 = arith.constant 0 : index
    %c0_11 = arith.constant 0 : index
    %13 = vector.load %arg3[%c0_9, %c0_10, %c0_11] : memref<1x1x8xf32, #tpu.memory_space<vmem>>, vector<1x1x8xf32>
    %14 = vector.shape_cast %13 : vector<1x1x8xf32> to vector<1x8xf32>
    %c0_12 = arith.constant 0 : index
    %c0_13 = arith.constant 0 : index
    %15 = vector.load %arg6[%c0_12, %c0_13] : memref<32x32xbf16, #tpu.memory_space<vmem>>, vector<32x32xbf16>
    %16 = vector.shape_cast %14 : vector<1x8xf32> to vector<1x8xf32>
    %17 = vector.broadcast %16 : vector<1x8xf32> to vector<8x8xf32>
    %18 = vector.extract_strided_slice %8 {offsets = [0, 0], sizes = [8, 16], strides = [1, 1]} : vector<8x32xbf16> to vector<8x16xbf16>
    %19 = vector.extract_strided_slice %11 {offsets = [0, 0], sizes = [8, 16], strides = [1, 1]} : vector<8x32xbf16> to vector<8x16xbf16>
    %cst_14 = arith.constant dense<0.000000e+00> : vector<8x8xf32>
    %20 = tpu.matmul %18, %19, %cst_14 {dimension_numbers = #tpu.dot_dimension_numbers<[1], [1], [0], [0], [0, 0, 1, 0], [], []>} : vector<8x16xbf16>, vector<8x16xbf16>, vector<8x8xf32> -> vector<8x8xf32>
    %cst_15 = arith.constant 2.500000e-01 : f32
    %21 = vector.broadcast %cst_15 : f32 to vector<8x8xf32>
    %22 = arith.mulf %20, %21 : vector<8x8xf32>
    %23 = arith.addf %22, %17 : vector<8x8xf32>
    %cst_16 = arith.constant dense<0xFF800000> : vector<8xf32>
    %24 = vector.multi_reduction <maximumf>, %23, %cst_16 [1] : vector<8x8xf32> to vector<8xf32>
    %25 = vector.shape_cast %24 : vector<8xf32> to vector<8x1xf32>
    %26 = vector.broadcast %25 : vector<8x1xf32> to vector<8x8xf32>
    %27 = arith.subf %23, %26 : vector<8x8xf32>
    %28 = math.exp %27 : vector<8x8xf32>
    %cst_17 = arith.constant dense<0.000000e+00> : vector<8xf32>
    %29 = vector.multi_reduction <add>, %28, %cst_17 [1] : vector<8x8xf32> to vector<8xf32>
    %30 = vector.shape_cast %29 : vector<8xf32> to vector<8x1xf32>
    %31 = tpu.reciprocal %30 {approx = true} : vector<8x1xf32> -> vector<8x1xf32>
    %32 = vector.broadcast %31 : vector<8x1xf32> to vector<8x8xf32>
    %33 = arith.mulf %28, %32 : vector<8x8xf32>
    %34 = arith.truncf %33 : vector<8x8xf32> to vector<8x8xbf16>
    %35 = vector.extract_strided_slice %12 {offsets = [0, 0], sizes = [8, 16], strides = [1, 1]} : vector<8x32xbf16> to vector<8x16xbf16>
    %cst_18 = arith.constant dense<0.000000e+00> : vector<8x16xf32>
    %36 = tpu.matmul %34, %35, %cst_18 {dimension_numbers = #tpu.dot_dimension_numbers<[1], [0], [0], [1], [0, 0, 1, 1], [], []>} : vector<8x8xbf16>, vector<8x16xbf16>, vector<8x16xf32> -> vector<8x16xf32>
    %37 = vector.extract_strided_slice %8 {offsets = [0, 16], sizes = [8, 16], strides = [1, 1]} : vector<8x32xbf16> to vector<8x16xbf16>
    %38 = vector.extract_strided_slice %11 {offsets = [0, 16], sizes = [8, 16], strides = [1, 1]} : vector<8x32xbf16> to vector<8x16xbf16>
    %cst_19 = arith.constant dense<0.000000e+00> : vector<8x8xf32>
    %39 = tpu.matmul %37, %38, %cst_19 {dimension_numbers = #tpu.dot_dimension_numbers<[1], [1], [0], [0], [0, 0, 1, 0], [], []>} : vector<8x16xbf16>, vector<8x16xbf16>, vector<8x8xf32> -> vector<8x8xf32>
    %cst_20 = arith.constant 2.500000e-01 : f32
    %40 = vector.broadcast %cst_20 : f32 to vector<8x8xf32>
    %41 = arith.mulf %39, %40 : vector<8x8xf32>
    %42 = arith.addf %41, %17 : vector<8x8xf32>
    %cst_21 = arith.constant dense<0xFF800000> : vector<8xf32>
    %43 = vector.multi_reduction <maximumf>, %42, %cst_21 [1] : vector<8x8xf32> to vector<8xf32>
    %44 = vector.shape_cast %43 : vector<8xf32> to vector<8x1xf32>
    %45 = vector.broadcast %44 : vector<8x1xf32> to vector<8x8xf32>
    %46 = arith.subf %42, %45 : vector<8x8xf32>
    %47 = math.exp %46 : vector<8x8xf32>
    %cst_22 = arith.constant dense<0.000000e+00> : vector<8xf32>
    %48 = vector.multi_reduction <add>, %47, %cst_22 [1] : vector<8x8xf32> to vector<8xf32>
    %49 = vector.shape_cast %48 : vector<8xf32> to vector<8x1xf32>
    %50 = tpu.reciprocal %49 {approx = true} : vector<8x1xf32> -> vector<8x1xf32>
    %51 = vector.broadcast %50 : vector<8x1xf32> to vector<8x8xf32>
    %52 = arith.mulf %47, %51 : vector<8x8xf32>
    %53 = arith.truncf %52 : vector<8x8xf32> to vector<8x8xbf16>
    %54 = vector.extract_strided_slice %12 {offsets = [0, 16], sizes = [8, 16], strides = [1, 1]} : vector<8x32xbf16> to vector<8x16xbf16>
    %cst_23 = arith.constant dense<0.000000e+00> : vector<8x16xf32>
    %55 = tpu.matmul %53, %54, %cst_23 {dimension_numbers = #tpu.dot_dimension_numbers<[1], [0], [0], [1], [0, 0, 1, 1], [], []>} : vector<8x8xbf16>, vector<8x16xbf16>, vector<8x16xf32> -> vector<8x16xf32>
    %56 = tpu.concatenate %36, %55 in 1 : vector<8x16xf32>, vector<8x16xf32> -> vector<8x32xf32>
    %57 = arith.truncf %56 : vector<8x32xf32> to vector<8x32xbf16>
    %cst_24 = arith.constant dense<0.000000e+00> : vector<8x32xf32>
    %58 = tpu.matmul %57, %15, %cst_24 {dimension_numbers = #tpu.dot_dimension_numbers<[1], [0], [0], [1], [0, 0, 1, 1], [], []>} : vector<8x32xbf16>, vector<32x32xbf16>, vector<8x32xf32> -> vector<8x32xf32>
    %59 = arith.addf %1, %58 : vector<8x32xf32>
    %c0_25 = arith.constant 0 : index
    %c0_26 = arith.constant 0 : index
    %60 = vector.load %arg7[%c0_25, %c0_26] : memref<1x32xf32, #tpu.memory_space<vmem>>, vector<1x32xf32>
    %61 = vector.broadcast %60 : vector<1x32xf32> to vector<8x32xf32>
    %62 = arith.addf %59, %61 : vector<8x32xf32>
    %cst_27 = arith.constant dense<0.000000e+00> : vector<8xf32>
    %63 = vector.multi_reduction <add>, %62, %cst_27 [1] : vector<8x32xf32> to vector<8xf32>
    %64 = vector.shape_cast %63 : vector<8xf32> to vector<8x1xf32>
    %cst_28 = arith.constant 3.200000e+01 : f32
    %65 = vector.broadcast %cst_28 : f32 to vector<8x1xf32>
    %66 = arith.divf %64, %65 : vector<8x1xf32>
    %67 = vector.broadcast %66 : vector<8x1xf32> to vector<8x32xf32>
    %68 = arith.subf %62, %67 : vector<8x32xf32>
    %69 = arith.mulf %68, %68 : vector<8x32xf32>
    %cst_29 = arith.constant dense<0.000000e+00> : vector<8xf32>
    %70 = vector.multi_reduction <add>, %69, %cst_29 [1] : vector<8x32xf32> to vector<8xf32>
    %71 = vector.shape_cast %70 : vector<8xf32> to vector<8x1xf32>
    %cst_30 = arith.constant 3.200000e+01 : f32
    %72 = vector.broadcast %cst_30 : f32 to vector<8x1xf32>
    %73 = arith.divf %71, %72 : vector<8x1xf32>
    %cst_31 = arith.constant 9.99999974E-6 : f32
    %74 = vector.broadcast %cst_31 : f32 to vector<8x1xf32>
    %75 = arith.addf %73, %74 : vector<8x1xf32>
    %76 = math.rsqrt %75 : vector<8x1xf32>
    %77 = vector.broadcast %76 : vector<8x1xf32> to vector<8x32xf32>
    %78 = arith.mulf %68, %77 : vector<8x32xf32>
    %c0_32 = arith.constant 0 : index
    %c0_33 = arith.constant 0 : index
    %79 = vector.load %arg8[%c0_32, %c0_33] : memref<1x32xf32, #tpu.memory_space<vmem>>, vector<1x32xf32>
    %80 = vector.broadcast %79 : vector<1x32xf32> to vector<8x32xf32>
    %81 = arith.mulf %78, %80 : vector<8x32xf32>
    %c0_34 = arith.constant 0 : index
    %c0_35 = arith.constant 0 : index
    %82 = vector.load %arg9[%c0_34, %c0_35] : memref<1x32xf32, #tpu.memory_space<vmem>>, vector<1x32xf32>
    %83 = vector.broadcast %82 : vector<1x32xf32> to vector<8x32xf32>
    %84 = arith.addf %81, %83 : vector<8x32xf32>
    %c0_36 = arith.constant 0 : index
    %c0_37 = arith.constant 0 : index
    %c0_38 = arith.constant 0 : index
    %85 = vector.load %arg10[%c0_36, %c0_37, %c0_38] : memref<1x8x32xf32, #tpu.memory_space<vmem>>, vector<1x8x32xf32>
    %86 = vector.shape_cast %85 : vector<1x8x32xf32> to vector<8x32xf32>
    %87 = vector.shape_cast %84 : vector<8x32xf32> to vector<1x8x32xf32>
    tpu.vector_store %arg10[%c0_36, %c0_37, %c0_38], %87 {strides = array<i32>} : memref<1x8x32xf32, #tpu.memory_space<vmem>>, vector<1x8x32xf32>,
    return
  }
  func.func @transform_0(%arg0: i32) -> (i32, i32, i32) {
    %c0_i32 = arith.constant 0 : i32
    %c0_i32_0 = arith.constant 0 : i32
    %c0_i32_1 = arith.constant 0 : i32
    return %arg0, %c0_i32, %c0_i32_0 : i32, i32, i32
  }
  func.func @transform_1(%arg0: i32) -> (i32, i32, i32) {
    %c0_i32 = arith.constant 0 : i32
    %c0_i32_0 = arith.constant 0 : i32
    %c0_i32_1 = arith.constant 0 : i32
    return %arg0, %c0_i32, %c0_i32_0 : i32, i32, i32
  }
  func.func @transform_2(%arg0: i32) -> (i32, i32, i32) {
    %c0_i32 = arith.constant 0 : i32
    %c0_i32_0 = arith.constant 0 : i32
    %c0_i32_1 = arith.constant 0 : i32
    return %arg0, %c0_i32, %c0_i32_0 : i32, i32, i32
  }
  func.func @transform_3(%arg0: i32) -> (i32, i32) {
    %c0_i32 = arith.constant 0 : i32
    %c0_i32_0 = arith.constant 0 : i32
    %c0_i32_1 = arith.constant 0 : i32
    return %c0_i32, %c0_i32_0 : i32, i32
  }
  func.func @transform_4(%arg0: i32) -> (i32, i32) {
    %c0_i32 = arith.constant 0 : i32
    %c0_i32_0 = arith.constant 0 : i32
    %c0_i32_1 = arith.constant 0 : i32
    return %c0_i32, %c0_i32_0 : i32, i32
  }
  func.func @transform_5(%arg0: i32) -> (i32, i32) {
    %c0_i32 = arith.constant 0 : i32
    %c0_i32_0 = arith.constant 0 : i32
    %c0_i32_1 = arith.constant 0 : i32
    return %c0_i32, %c0_i32_0 : i32, i32
  }
  func.func @transform_6(%arg0: i32) -> (i32, i32) {
    %c0_i32 = arith.constant 0 : i32
    %c0_i32_0 = arith.constant 0 : i32
    %c0_i32_1 = arith.constant 0 : i32
    return %c0_i32, %c0_i32_0 : i32, i32
  }
  func.func @transform_7(%arg0: i32) -> (i32, i32) {
    %c0_i32 = arith.constant 0 : i32
    %c0_i32_0 = arith.constant 0 : i32
    %c0_i32_1 = arith.constant 0 : i32
    return %c0_i32, %c0_i32_0 : i32, i32
  }
  func.func @transform_8(%arg0: i32) -> (i32, i32) {
    %c0_i32 = arith.constant 0 : i32
    %c0_i32_0 = arith.constant 0 : i32
    %c0_i32_1 = arith.constant 0 : i32
    return %c0_i32, %c0_i32_0 : i32, i32
  }
  func.func @transform_9(%arg0: i32) -> (i32, i32, i32) {
    %c0_i32 = arith.constant 0 : i32
    %c0_i32_0 = arith.constant 0 : i32
    %c0_i32_1 = arith.constant 0 : i32
    return %arg0, %c0_i32, %c0_i32_0 : i32, i32, i32
  }
}

module attributes {stable_mosaic.version = 11 : i64} {
  func.func @kernel(%arg0: i32, %arg1: i32, %arg2: memref<16x32xbf16, #tpu.memory_space<vmem>>, %arg3: memref<32x16xbf16, #tpu.memory_space<vmem>>, %arg4: memref<1x16xf32, #tpu.memory_space<vmem>>, %arg5: memref<16x16xf32, #tpu.memory_space<vmem>>) attributes {dimension_semantics = [#tpu.dimension_semantics<parallel>, #tpu.dimension_semantics<parallel>], iteration_bounds = array<i64: 1, 1>, scalar_prefetch = 0 : i64, scratch_operands = 0 : i64, tpu.core_type = #tpu.core_type<tc>, window_params = [{transform_indices = @transform_0, window_bounds = array<i64: 16, 32>}, {transform_indices = @transform_1, window_bounds = array<i64: 32, 16>}, {transform_indices = @transform_2, window_bounds = array<i64: 1, 16>}, {transform_indices = @transform_3, window_bounds = array<i64: 16, 16>}]} {
    %c0 = arith.constant 0 : index
    %c0_0 = arith.constant 0 : index
    %0 = vector.load %arg2[%c0, %c0_0] : memref<16x32xbf16, #tpu.memory_space<vmem>>, vector<16x32xbf16>
    %c0_1 = arith.constant 0 : index
    %c0_2 = arith.constant 0 : index
    %1 = vector.load %arg3[%c0_1, %c0_2] : memref<32x16xbf16, #tpu.memory_space<vmem>>, vector<32x16xbf16>
    %cst = arith.constant dense<0.000000e+00> : vector<16x16xf32>
    %2 = tpu.matmul %0, %1, %cst {dimension_numbers = #tpu.dot_dimension_numbers<[1], [0], [0], [1], [0, 0, 1, 1], [], []>} : vector<16x32xbf16>, vector<32x16xbf16>, vector<16x16xf32> -> vector<16x16xf32>
    %c0_3 = arith.constant 0 : index
    %c0_4 = arith.constant 0 : index
    %3 = vector.load %arg4[%c0_3, %c0_4] : memref<1x16xf32, #tpu.memory_space<vmem>>, vector<1x16xf32>
    %4 = vector.broadcast %3 : vector<1x16xf32> to vector<16x16xf32>
    %5 = arith.addf %2, %4 : vector<16x16xf32>
    %c0_5 = arith.constant 0 : index
    %c0_6 = arith.constant 0 : index
    %6 = vector.load %arg5[%c0_5, %c0_6] : memref<16x16xf32, #tpu.memory_space<vmem>>, vector<16x16xf32>
    tpu.vector_store %arg5[%c0_5, %c0_6], %5 {strides = array<i32>} : memref<16x16xf32, #tpu.memory_space<vmem>>, vector<16x16xf32>,
    return
  }
  func.func @transform_0(%arg0: i32, %arg1: i32) -> (i32, i32) {
    %c0_i32 = arith.constant 0 : i32
    %c0_i32_0 = arith.constant 0 : i32
    return %arg0, %c0_i32 : i32, i32
  }
  func.func @transform_1(%arg0: i32, %arg1: i32) -> (i32, i32) {
    %c0_i32 = arith.constant 0 : i32
    %c0_i32_0 = arith.constant 0 : i32
    return %c0_i32, %arg1 : i32, i32
  }
  func.func @transform_2(%arg0: i32, %arg1: i32) -> (i32, i32) {
    %c0_i32 = arith.constant 0 : i32
    %c0_i32_0 = arith.constant 0 : i32
    return %c0_i32, %arg1 : i32, i32
  }
  func.func @transform_3(%arg0: i32, %arg1: i32) -> (i32, i32) {
    %c0_i32 = arith.constant 0 : i32
    return %arg0, %arg1 : i32, i32
  }
}

</mosaic_0001>

<llo_original>
// kernel: custom-call
$region0: #{custom-call}
  %s0 = inlined_call_operand.vmem [shape: s32[2], index: 0, kind: output, shape index: {}]

// kernel: custom-call.1
$region0: #{custom-call.1}
  %s0 = inlined_call_operand.vmem [shape: pred[2], index: 0, kind: output, shape index: {}]

// kernel: _generate_jit.10
$region0: #{_generate_jit.10}
  #allocation0 [shape = 'u32[]', space=smem, size = 0x4, offset = 0x4, fixed_abs, tag = 'smem constant byte address 0x4 - core index']
  #allocation1 [shape = 'u32[144,128]{1,0:T(1,128)}', space=vmem, size = 0x12000, scoped, tag = 'internal scratch']
  %s0 = inlined_call_operand.vmem [shape: bf16[16,32], index: 0, kind: input, shape index: {}]
  %s1 = inlined_call_operand.vmem [shape: bf16[32,64], index: 1, kind: input, shape index: {}]
  %s2 = inlined_call_operand.vmem [shape: f32[1,64], index: 2, kind: input, shape index: {}]
  %s3 = inlined_call_operand.vmem [shape: bf16[16,64], index: 3, kind: output, shape index: {}]
  %s4 = sld [smem:[#allocation0]]
  $region22: #{_generate_jit.10} parent=0
    _
  %s6 = ssub.s32 1, %s4
  %s7 = scalar_select 0, %s6, %s4
  // Predicated region
  $region2: #{_generate_jit.10} parent=0 // pred_check
    _
  $region3: #{_generate_jit.10} parent=0 // pred_check_branch
    %9 = sbr.rel (0) target = $region5
  $region4: #{_generate_jit.10} parent=0 // pred_region
    _
  $region5: #{_generate_jit.10} parent=0 // pred_fallthru
    _
  // Predicated region
  $region6: #{_generate_jit.10} parent=0 // pred_check
    _
  $region7: #{_generate_jit.10} parent=0 // pred_check_branch
    %11 = sbr.rel (0) target = $region9
  $region8: #{_generate_jit.10} parent=0 // pred_region
    _
  $region9: #{_generate_jit.10} parent=0 // pred_fallthru
    _
  // Predicated region
  $region10: #{_generate_jit.10} parent=0 // pred_check
    _
  $region11: #{_generate_jit.10} parent=0 // pred_check_branch
    %13 = sbr.rel (0) target = $region13
  $region12: #{_generate_jit.10} parent=0 // pred_region
    _
  $region13: #{_generate_jit.10} parent=0 // pred_fallthru
    _
  %v15 = vld [vmem:[%s0] sm:$0xf]
  %v16 = vld [vmem:[%s0 + $0x4] sm:$0xf]
  %v17 = vld [vmem:[%s1] sm:$0xf]
  %v18 = vld [vmem:[%s1 + $0x4] sm:$0xf]
  %v19 = vld [vmem:[%s1 + $0x8] sm:$0xf]
  %v20 = vld [vmem:[%s1 + $0xc] sm:$0xf]
  %v21 = vld [vmem:[%s2] sm:$0x1]
  %v23 = vlaneseq
  %v24 = vshrl.u32 %v23, 7
  %v25 = vsub.s32 0, %v24
  %v26 = vrot.slane %v21, %v25
  %v30 = vunpack.c.l.b16 %v15
  %v31 = vunpack.c.l.b16 %v16
  %v32 = vpack.c.b16 %v31, %v30
  %v37 = vunpack.c.l.b16 %v17
  %v38 = vunpack.c.l.b16 %v18
  %v39 = vunpack.c.l.b16 %v19
  %v40 = vunpack.c.l.b16 %v20
  %v41 = vpack.c.b16 %v38, %v37
  %v42 = vpack.c.b16 %v40, %v39
  %vm45 = vcmask 261120
  %v47 = vsel %vm45, %v32, 0
  %49 = vmatprep.subr.bf16.mxu0 0
  %50 = vmatpush1.bf16.msra.mxu0 %v41
  %51 = vmatprep.subr.bf16.mxu0 0
  %52 = vmatpush1.bf16.msra.mxu0 %v42
  %53 = vmatprep.subr.bf16.mxu0 0
  %54 = vmatpush1.bf16.msra.mxu0 0
  %55 = vmatprep.subr.bf16.mxu0 0
  %56 = vmatpush1.bf16.msra.mxu0 0
  %57 = vmatprep.subr.bf16.mxu0 0
  %58 = vmatpush1.bf16.msra.mxu0 0
  %59 = vmatprep.subr.bf16.mxu0 0
  %60 = vmatpush1.bf16.msra.mxu0 0
  %61 = vmatprep.subr.bf16.mxu0 0
  %62 = vmatpush1.bf16.msra.mxu0 0
  %63 = vmatprep.subr.bf16.mxu0 0
  %64 = vmatpush1.bf16.msra.mxu0 0
  %65 = vmatprep.subr.bf16.mxu0 0
  %66 = vmatpush1.bf16.msra.mxu0 0
  %67 = vmatprep.subr.bf16.mxu0 0
  %68 = vmatpush1.bf16.msra.mxu0 0
  %69 = vmatprep.subr.bf16.mxu0 0
  %70 = vmatpush1.bf16.msra.mxu0 0
  %71 = vmatprep.subr.bf16.mxu0 0
  %72 = vmatpush1.bf16.msra.mxu0 0
  %73 = vmatprep.subr.bf16.mxu0 0
  %74 = vmatpush1.bf16.msra.mxu0 0
  %75 = vmatprep.subr.bf16.mxu0 0
  %76 = vmatpush1.bf16.msra.mxu0 0
  %77 = vmatprep.subr.bf16.mxu0 0
  %78 = vmatpush1.bf16.msra.mxu0 0
  %79 = vmatprep.subr.bf16.mxu0 0
  %80 = vmatpush1.bf16.msra.mxu0 0
  %81 = vmatprep.mubr.bf16.mxu0 0
  %82 = vmatmul.mubr.bf16.gmra.mrb[0].mxu0 %v47
  %v83 = vpop.f32.mrb[0].mxu0
  %v84 = vadd.f32 %v26, %v83
  %v85 = vpop.f32.mrb[0].mxu0
  %v86 = vpop.f32.mrb[0].mxu0
  %v87 = vadd.f32 %v26, %v86
  %v88 = vpop.f32.mrb[0].mxu0
  %89 = vdwg.mxu0
  %v90 = vpack.c.bf16 %v87, %v84
  %v92 = vunpack.c.l.b16 %v90
  %v93 = vunpack.c.h.b16 %v90
  %v94 = vpack.c.b16 %v92, %v92
  %v95 = vpack.c.b16 %v93, %v93
  %vm98 = vcmask 519168
  %99 = vst.msk [vmem:[%s3] sm:$0xf] %vm98, %v94
  %100 = vst.msk [vmem:[%s3 + $0x4] sm:$0xf] %vm98, %v95
  // Predicated region
  $region14: #{_generate_jit.10} parent=0 // pred_check
    _
  $region15: #{_generate_jit.10} parent=0 // pred_check_branch
    %102 = sbr.rel (0) target = $region17
  $region16: #{_generate_jit.10} parent=0 // pred_region
    _
  $region17: #{_generate_jit.10} parent=0 // pred_fallthru
    _
  // Predicated region
  $region18: #{_generate_jit.10} parent=0 // pred_check
    _
  $region19: #{_generate_jit.10} parent=0 // pred_check_branch
    %104 = sbr.rel (0) target = $region21
  $region20: #{_generate_jit.10} parent=0 // pred_region
    _
  $region21: #{_generate_jit.10} parent=0 // pred_fallthru
    _

// kernel: _generate_jit.6
$region0: #{_generate_jit.6}
  #allocation0 [shape = 'u32[]', space=smem, size = 0x4, offset = 0x4, fixed_abs, tag = 'smem constant byte address 0x4 - core index']
  #allocation1 [shape = 'u32[144,128]{1,0:T(1,128)}', space=vmem, size = 0x12000, scoped, tag = 'internal scratch']
  %s0 = inlined_call_operand.vmem [shape: f32[2,8,32], index: 0, kind: input, shape index: {}]
  %s1 = inlined_call_operand.vmem [shape: f32[2,1,8], index: 1, kind: input, shape index: {}]
  %s2 = inlined_call_operand.vmem [shape: bf16[32,96], index: 2, kind: input, shape index: {}]
  %s3 = inlined_call_operand.vmem [shape: f32[1,96], index: 3, kind: input, shape index: {}]
  %s4 = inlined_call_operand.vmem [shape: bf16[32,32], index: 4, kind: input, shape index: {}]
  %s5 = inlined_call_operand.vmem [shape: f32[1,32], index: 5, kind: input, shape index: {}]
  %s6 = inlined_call_operand.vmem [shape: f32[1,32], index: 6, kind: input, shape index: {}]
  %s7 = inlined_call_operand.vmem [shape: f32[1,32], index: 7, kind: input, shape index: {}]
  %s8 = inlined_call_operand.vmem [shape: f32[2,8,32], index: 8, kind: output, shape index: {}]
  %s9 = sld [smem:[#allocation0]]
  $region65: #{_generate_jit.6} parent=0
    _
  %s11 = ssub.s32 1, %s9
  %s12 = scalar_select 0, %s11, %s9
  loop: start=0, step=1, limit=4
  $region2: #{_generate_jit.6} parent=0 // loop_pre_header
    _
  $region3: #{_generate_jit.6} parent=0 // loop_header
    %s14 = sphi 0, %s18
    %p15 = scmp.ge.s32.totalorder %s14, 4
    %s24 = sphi 0, %s26
    %s27 = sphi 0, %s24
    %s28 = sphi 0, %s27
    %s44 = sphi 0, %s28
    %s50 = sphi 0, %s52
    %s53 = sphi 0, %s50
    %s54 = sphi 0, %s53
    %s70 = sphi 0, %s54
    %s74 = sphi 0, %s74
    %s76 = sphi 0, %s74
    %s77 = sphi 0, %s76
    %s91 = sphi 0, %s77
    %s95 = sphi 0, %s95
    %s97 = sphi 0, %s95
    %s98 = sphi 0, %s97
    %s112 = sphi 0, %s98
    %s116 = sphi 0, %s116
    %s118 = sphi 0, %s116
    %s119 = sphi 0, %s118
    %s133 = sphi 0, %s119
    %s137 = sphi 0, %s137
    %s139 = sphi 0, %s137
    %s140 = sphi 0, %s139
    %s154 = sphi 0, %s140
    %s158 = sphi 0, %s158
    %s160 = sphi 0, %s158
    %s161 = sphi 0, %s160
    %s175 = sphi 0, %s161
    %s179 = sphi 0, %s179
    %s181 = sphi 0, %s179
    %s182 = sphi 0, %s181
    %s196 = sphi 0, %s182
    %s202 = sphi 0, %s204
    %s205 = sphi 0, %s202
    %s206 = sphi 0, %s205
    %s222 = sphi 0, %s206
  $region4: #{_generate_jit.6} parent=0 // loop_header_branch
    %17 = sbr.rel (%p15) target = $region8
  $region5: #{_generate_jit.6} parent=0 // loop_body
    %s19 = ssub.s32 %s14, 1
    %s20 = ssub.s32 %s14, 2
    %s21 = sadd.s32 %s14, 1
    %s22 = ssub.s32 %s14, %s21
    %p23 = scmp.eq.s32.totalorder %s22, 0
    %s25 = sadd.s32 %s24, 1
    %s26 = scalar_select %p23, %s24, %s25
    %p29 = pneg %p23
    %p30 = scmp.eq.s32.totalorder %s14, 1
    %p31 = por %p29, %p30
    %p32 = scmp.ne.s32.totalorder %s24, %s27
    %p33 = scmp.eq.s32.totalorder %s14, 0
    %p34 = por %p32, %p33
    %p35 = scmp.ne.s32.totalorder %s24, %s27
    %p36 = scmp.eq.s32.totalorder %s19, 1
    %p37 = por %p35, %p36
    %p38 = scmp.ne.s32.totalorder %s27, %s28
    %p39 = scmp.eq.s32.totalorder %s19, 0
    %p40 = por %p38, %p39
    %p41 = scmp.ne.s32.totalorder %s27, %s28
    %p42 = scmp.eq.s32.totalorder %s20, 1
    %p43 = por %p41, %p42
    %p45 = scmp.ne.s32.totalorder %s28, %s44
    %p46 = scmp.eq.s32.totalorder %s20, 0
    %p47 = por %p45, %p46
    %s48 = ssub.s32 %s14, %s21
    %p49 = scmp.eq.s32.totalorder %s48, 0
    %s51 = sadd.s32 %s50, 1
    %s52 = scalar_select %p49, %s50, %s51
    %p55 = pneg %p49
    %p56 = scmp.eq.s32.totalorder %s14, 1
    %p57 = por %p55, %p56
    %p58 = scmp.ne.s32.totalorder %s50, %s53
    %p59 = scmp.eq.s32.totalorder %s14, 0
    %p60 = por %p58, %p59
    %p61 = scmp.ne.s32.totalorder %s50, %s53
    %p62 = scmp.eq.s32.totalorder %s19, 1
    %p63 = por %p61, %p62
    %p64 = scmp.ne.s32.totalorder %s53, %s54
    %p65 = scmp.eq.s32.totalorder %s19, 0
    %p66 = por %p64, %p65
    %p67 = scmp.ne.s32.totalorder %s53, %s54
    %p68 = scmp.eq.s32.totalorder %s20, 1
    %p69 = por %p67, %p68
    %p71 = scmp.ne.s32.totalorder %s54, %s70
    %p72 = scmp.eq.s32.totalorder %s20, 0
    %p73 = por %p71, %p72
    %s75 = sadd.s32 %s74, 1
    %p78 = scmp.eq.s32.totalorder %s14, 1
    %p79 = scmp.ne.s32.totalorder %s74, %s76
    %p80 = scmp.eq.s32.totalorder %s14, 0
    %p81 = por %p79, %p80
    %p82 = scmp.ne.s32.totalorder %s74, %s76
    %p83 = scmp.eq.s32.totalorder %s19, 1
    %p84 = por %p82, %p83
    %p85 = scmp.ne.s32.totalorder %s76, %s77
    %p86 = scmp.eq.s32.totalorder %s19, 0
    %p87 = por %p85, %p86
    %p88 = scmp.ne.s32.totalorder %s76, %s77
    %p89 = scmp.eq.s32.totalorder %s20, 1
    %p90 = por %p88, %p89
    %p92 = scmp.ne.s32.totalorder %s77, %s91
    %p93 = scmp.eq.s32.totalorder %s20, 0
    %p94 = por %p92, %p93
    %s96 = sadd.s32 %s95, 1
    %p99 = scmp.eq.s32.totalorder %s14, 1
    %p100 = scmp.ne.s32.totalorder %s95, %s97
    %p101 = scmp.eq.s32.totalorder %s14, 0
    %p102 = por %p100, %p101
    %p103 = scmp.ne.s32.totalorder %s95, %s97
    %p104 = scmp.eq.s32.totalorder %s19, 1
    %p105 = por %p103, %p104
    %p106 = scmp.ne.s32.totalorder %s97, %s98
    %p107 = scmp.eq.s32.totalorder %s19, 0
    %p108 = por %p106, %p107
    %p109 = scmp.ne.s32.totalorder %s97, %s98
    %p110 = scmp.eq.s32.totalorder %s20, 1
    %p111 = por %p109, %p110
    %p113 = scmp.ne.s32.totalorder %s98, %s112
    %p114 = scmp.eq.s32.totalorder %s20, 0
    %p115 = por %p113, %p114
    %s117 = sadd.s32 %s116, 1
    %p120 = scmp.eq.s32.totalorder %s14, 1
    %p121 = scmp.ne.s32.totalorder %s116, %s118
    %p122 = scmp.eq.s32.totalorder %s14, 0
    %p123 = por %p121, %p122
    %p124 = scmp.ne.s32.totalorder %s116, %s118
    %p125 = scmp.eq.s32.totalorder %s19, 1
    %p126 = por %p124, %p125
    %p127 = scmp.ne.s32.totalorder %s118, %s119
    %p128 = scmp.eq.s32.totalorder %s19, 0
    %p129 = por %p127, %p128
    %p130 = scmp.ne.s32.totalorder %s118, %s119
    %p131 = scmp.eq.s32.totalorder %s20, 1
    %p132 = por %p130, %p131
    %p134 = scmp.ne.s32.totalorder %s119, %s133
    %p135 = scmp.eq.s32.totalorder %s20, 0
    %p136 = por %p134, %p135
    %s138 = sadd.s32 %s137, 1
    %p141 = scmp.eq.s32.totalorder %s14, 1
    %p142 = scmp.ne.s32.totalorder %s137, %s139
    %p143 = scmp.eq.s32.totalorder %s14, 0
    %p144 = por %p142, %p143
    %p145 = scmp.ne.s32.totalorder %s137, %s139
    %p146 = scmp.eq.s32.totalorder %s19, 1
    %p147 = por %p145, %p146
    %p148 = scmp.ne.s32.totalorder %s139, %s140
    %p149 = scmp.eq.s32.totalorder %s19, 0
    %p150 = por %p148, %p149
    %p151 = scmp.ne.s32.totalorder %s139, %s140
    %p152 = scmp.eq.s32.totalorder %s20, 1
    %p153 = por %p151, %p152
    %p155 = scmp.ne.s32.totalorder %s140, %s154
    %p156 = scmp.eq.s32.totalorder %s20, 0
    %p157 = por %p155, %p156
    %s159 = sadd.s32 %s158, 1
    %p162 = scmp.eq.s32.totalorder %s14, 1
    %p163 = scmp.ne.s32.totalorder %s158, %s160
    %p164 = scmp.eq.s32.totalorder %s14, 0
    %p165 = por %p163, %p164
    %p166 = scmp.ne.s32.totalorder %s158, %s160
    %p167 = scmp.eq.s32.totalorder %s19, 1
    %p168 = por %p166, %p167
    %p169 = scmp.ne.s32.totalorder %s160, %s161
    %p170 = scmp.eq.s32.totalorder %s19, 0
    %p171 = por %p169, %p170
    %p172 = scmp.ne.s32.totalorder %s160, %s161
    %p173 = scmp.eq.s32.totalorder %s20, 1
    %p174 = por %p172, %p173
    %p176 = scmp.ne.s32.totalorder %s161, %s175
    %p177 = scmp.eq.s32.totalorder %s20, 0
    %p178 = por %p176, %p177
    %s180 = sadd.s32 %s179, 1
    %p183 = scmp.eq.s32.totalorder %s14, 1
    %p184 = scmp.ne.s32.totalorder %s179, %s181
    %p185 = scmp.eq.s32.totalorder %s14, 0
    %p186 = por %p184, %p185
    %p187 = scmp.ne.s32.totalorder %s179, %s181
    %p188 = scmp.eq.s32.totalorder %s19, 1
    %p189 = por %p187, %p188
    %p190 = scmp.ne.s32.totalorder %s181, %s182
    %p191 = scmp.eq.s32.totalorder %s19, 0
    %p192 = por %p190, %p191
    %p193 = scmp.ne.s32.totalorder %s181, %s182
    %p194 = scmp.eq.s32.totalorder %s20, 1
    %p195 = por %p193, %p194
    %p197 = scmp.ne.s32.totalorder %s182, %s196
    %p198 = scmp.eq.s32.totalorder %s20, 0
    %p199 = por %p197, %p198
    %s200 = ssub.s32 %s14, %s21
    %p201 = scmp.eq.s32.totalorder %s200, 0
    %s203 = sadd.s32 %s202, 1
    %s204 = scalar_select %p201, %s202, %s203
    %p207 = pneg %p201
    %p208 = scmp.eq.s32.totalorder %s14, 1
    %p209 = por %p207, %p208
    %p210 = scmp.ne.s32.totalorder %s202, %s205
    %p211 = scmp.eq.s32.totalorder %s14, 0
    %p212 = por %p210, %p211
    %p213 = scmp.ne.s32.totalorder %s202, %s205
    %p214 = scmp.eq.s32.totalorder %s19, 1
    %p215 = por %p213, %p214
    %p216 = scmp.ne.s32.totalorder %s205, %s206
    %p217 = scmp.eq.s32.totalorder %s19, 0
    %p218 = por %p216, %p217
    %p219 = scmp.ne.s32.totalorder %s205, %s206
    %p220 = scmp.eq.s32.totalorder %s20, 1
    %p221 = por %p219, %p220
    %p223 = scmp.ne.s32.totalorder %s206, %s222
    %p224 = scmp.eq.s32.totalorder %s20, 0
    %p225 = por %p223, %p224
    %p226 = scmp.le.s32.totalorder 1, %s14
    %p227 = scmp.lt.s32.totalorder %s14, 3
    %p228 = pnand %p226, %p227
    %p229 = pneg %p228
    // Predicated region
    $region9: #{_generate_jit.6} parent=5 // pred_check
      _
    $region10: #{_generate_jit.6} parent=5 // pred_check_branch
      %231 = sbr.rel (%p228) target = $region12
    $region11: #{_generate_jit.6} parent=5 // pred_region
      %s232 = ssub.s32 %s14, 1
      // Predicated region
      $region13: #{_generate_jit.6} parent=11 // pred_check
        %p233 = pneg %p87
      $region14: #{_generate_jit.6} parent=11 // pred_check_branch
        %235 = sbr.rel (%p233) target = $region16
      $region15: #{_generate_jit.6} parent=11 // pred_region
        _
      $region16: #{_generate_jit.6} parent=11 // pred_fallthru
        _
      // Predicated region
      $region17: #{_generate_jit.6} parent=11 // pred_check
        %p236 = pneg %p108
      $region18: #{_generate_jit.6} parent=11 // pred_check_branch
        %238 = sbr.rel (%p236) target = $region20
      $region19: #{_generate_jit.6} parent=11 // pred_region
        _
      $region20: #{_generate_jit.6} parent=11 // pred_fallthru
        _
      // Predicated region
      $region21: #{_generate_jit.6} parent=11 // pred_check
        %p239 = pneg %p129
      $region22: #{_generate_jit.6} parent=11 // pred_check_branch
        %241 = sbr.rel (%p239) target = $region24
      $region23: #{_generate_jit.6} parent=11 // pred_region
        _
      $region24: #{_generate_jit.6} parent=11 // pred_fallthru
        _
      // Predicated region
      $region25: #{_generate_jit.6} parent=11 // pred_check
        %p242 = pneg %p150
      $region26: #{_generate_jit.6} parent=11 // pred_check_branch
        %244 = sbr.rel (%p242) target = $region28
      $region27: #{_generate_jit.6} parent=11 // pred_region
        _
      $region28: #{_generate_jit.6} parent=11 // pred_fallthru
        _
      // Predicated region
      $region29: #{_generate_jit.6} parent=11 // pred_check
        %p245 = pneg %p171
      $region30: #{_generate_jit.6} parent=11 // pred_check_branch
        %247 = sbr.rel (%p245) target = $region32
      $region31: #{_generate_jit.6} parent=11 // pred_region
        _
      $region32: #{_generate_jit.6} parent=11 // pred_fallthru
        _
      // Predicated region
      $region33: #{_generate_jit.6} parent=11 // pred_check
        %p248 = pneg %p192
      $region34: #{_generate_jit.6} parent=11 // pred_check_branch
        %250 = sbr.rel (%p248) target = $region36
      $region35: #{_generate_jit.6} parent=11 // pred_region
        _
      $region36: #{_generate_jit.6} parent=11 // pred_fallthru
        _
    $region12: #{_generate_jit.6} parent=5 // pred_fallthru
      _
    %p251 = scmp.lt.s32.totalorder %s14, 2
    // Predicated region
    $region37: #{_generate_jit.6} parent=5 // pred_check
      %p252 = pneg %p251
    $region38: #{_generate_jit.6} parent=5 // pred_check_branch
      %254 = sbr.rel (%p252) target = $region40
    $region39: #{_generate_jit.6} parent=5 // pred_region
      // Predicated region
      $region41: #{_generate_jit.6} parent=39 // pred_check
        %p255 = pneg %p34
      $region42: #{_generate_jit.6} parent=39 // pred_check_branch
        %257 = sbr.rel (%p255) target = $region44
      $region43: #{_generate_jit.6} parent=39 // pred_region
        %p258 = scmp.lt.s32.totalorder %s14, 1
        %s259 = scalar_select %p258, %s14, 1
        %s260 = smul.addr %s259, 8
        %s261 = scalar_lea.vmem %s0, %s260
      $region44: #{_generate_jit.6} parent=39 // pred_fallthru
        _
      // Predicated region
      $region45: #{_generate_jit.6} parent=39 // pred_check
        %p262 = pneg %p60
      $region46: #{_generate_jit.6} parent=39 // pred_check_branch
        %264 = sbr.rel (%p262) target = $region48
      $region47: #{_generate_jit.6} parent=39 // pred_region
        %p265 = scmp.lt.s32.totalorder %s14, 1
        %s266 = scalar_select %p265, %s14, 1
        %s267 = scalar_lea.vmem %s1, %s266
      $region48: #{_generate_jit.6} parent=39 // pred_fallthru
        _
    $region40: #{_generate_jit.6} parent=5 // pred_fallthru
      _
    %p268 = scmp.le.s32.totalorder 1, %s14
    %p269 = scmp.lt.s32.totalorder %s14, 3
    %p270 = pnand %p268, %p269
    %p271 = pneg %p270
    // Predicated region
    $region49: #{_generate_jit.6} parent=5 // pred_check
      _
    $region50: #{_generate_jit.6} parent=5 // pred_check_branch
      %273 = sbr.rel (%p270) target = $region52
    $region51: #{_generate_jit.6} parent=5 // pred_region
      %s274 = ssub.s32 %s14, 1
      %p275 = scmp.lt.s32.totalorder %s19, 1
      %s276 = scalar_select %p275, %s19, 1
      %s277 = smul.addr %s276, 8
      %s278 = scalar_lea.vmem %s0, %s277
      %p279 = pneg %p40
      %p280 = pneg %p37
      %p281 = scmp.lt.s32.totalorder %s19, 1
      %s282 = scalar_select %p281, %s19, 1
      %s283 = scalar_lea.vmem %s1, %s282
      %p284 = pneg %p66
      %p285 = pneg %p63
      %p286 = pneg %p87
      %p287 = pneg %p84
      %p288 = pneg %p108
      %p289 = pneg %p105
      %p290 = pneg %p129
      %p291 = pneg %p126
      %p292 = pneg %p150
      %p293 = pneg %p147
      %p294 = pneg %p171
      %p295 = pneg %p168
      %p296 = pneg %p192
      %p297 = pneg %p189
      %p298 = pneg %p218
      %p299 = pneg %p215
      %p300 = scmp.lt.s32.totalorder %s19, 1
      %s301 = scalar_select %p300, %s19, 1
      %s302 = smul.addr %s301, 8
      %s303 = scalar_lea.vmem %s8, %s302
      %p304 = scmp.lt.s32.totalorder %s19, 1
      %s305 = scalar_select %p304, %s19, 1
      %s306 = smul.addr %s305, 8
      %s307 = scalar_lea.vmem %s0, %s306
      %p308 = scmp.lt.s32.totalorder %s19, 1
      %s309 = scalar_select %p308, %s19, 1
      %s310 = scalar_lea.vmem %s1, %s309
      %p311 = scmp.lt.s32.totalorder %s19, 1
      %s312 = scalar_select %p311, %s19, 1
      %s313 = smul.addr %s312, 8
      %s314 = scalar_lea.vmem %s8, %s313
      %v316 = vld [vmem:[%s307] sm:$0xff]
      %v317 = vpack.c.bf16 %v316, %v316
      %v318 = vld [vmem:[%s2] sm:$0xf]
      %v319 = vld [vmem:[%s2 + $0x4] sm:$0xf]
      %v320 = vld [vmem:[%s2 + $0x8] sm:$0xf]
      %v321 = vld [vmem:[%s2 + $0xc] sm:$0xf]
      %v322 = vld [vmem:[%s3] sm:$0x1]
      %v324 = vlaneseq
      %v325 = vshrl.u32 %v324, 7
      %v326 = vsub.s32 0, %v325
      %v327 = vrot.slane %v322, %v326
      %v333 = vunpack.c.l.b16 %v318
      %v334 = vunpack.c.l.b16 %v319
      %v335 = vunpack.c.l.b16 %v320
      %v336 = vunpack.c.l.b16 %v321
      %v337 = vpack.c.b16 %v334, %v333
      %v338 = vpack.c.b16 %v336, %v335
      %vm341 = vcmask 261120
      %v343 = vsel %vm341, %v317, 0
      %345 = vmatprep.subr.bf16.mxu0 0
      %346 = vmatpush1.bf16.msra.mxu0 %v337
      %347 = vmatprep.subr.bf16.mxu0 0
      %348 = vmatpush1.bf16.msra.mxu0 %v338
      %349 = vmatprep.subr.bf16.mxu0 0
      %350 = vmatpush1.bf16.msra.mxu0 0
      %351 = vmatprep.subr.bf16.mxu0 0
      %352 = vmatpush1.bf16.msra.mxu0 0
      %353 = vmatprep.subr.bf16.mxu0 0
      %354 = vmatpush1.bf16.msra.mxu0 0
      %355 = vmatprep.subr.bf16.mxu0 0
      %356 = vmatpush1.bf16.msra.mxu0 0
      %357 = vmatprep.subr.bf16.mxu0 0
      %358 = vmatpush1.bf16.msra.mxu0 0
      %359 = vmatprep.subr.bf16.mxu0 0
      %360 = vmatpush1.bf16.msra.mxu0 0
      %361 = vmatprep.subr.bf16.mxu0 0
      %362 = vmatpush1.bf16.msra.mxu0 0
      %363 = vmatprep.subr.bf16.mxu0 0
      %364 = vmatpush1.bf16.msra.mxu0 0
      %365 = vmatprep.subr.bf16.mxu0 0
      %366 = vmatpush1.bf16.msra.mxu0 0
      %367 = vmatprep.subr.bf16.mxu0 0
      %368 = vmatpush1.bf16.msra.mxu0 0
      %369 = vmatprep.subr.bf16.mxu0 0
      %370 = vmatpush1.bf16.msra.mxu0 0
      %371 = vmatprep.subr.bf16.mxu0 0
      %372 = vmatpush1.bf16.msra.mxu0 0
      %373 = vmatprep.subr.bf16.mxu0 0
      %374 = vmatpush1.bf16.msra.mxu0 0
      %375 = vmatprep.subr.bf16.mxu0 0
      %376 = vmatpush1.bf16.msra.mxu0 0
      %377 = vmatprep.mubr.bf16.mxu0 0
      %378 = vmatmul.mubr.bf16.gmra.mrb[0].mxu0 %v343
      %v379 = vpop.f32.mrb[0].mxu0
      %v380 = vadd.f32 %v327, %v379
      %v381 = vpop.f32.mrb[0].mxu0
      %v382 = vpop.f32.mrb[0].mxu0
      %v383 = vpop.f32.mrb[0].mxu0
      %384 = vdwg.mxu0
      %v385 = vpack.c.bf16 %v380, %v380
      %v386 = vld [vmem:[%s310] sm:$0x1]
      %v387 = vld [vmem:[%s4] sm:$0xf]
      %v388 = vld [vmem:[%s4 + $0x4] sm:$0xf]
      %v389 = vld [vmem:[%s4 + $0x8] sm:$0xf]
      %v390 = vld [vmem:[%s4 + $0xc] sm:$0xf]
      %v392 = vlaneseq
      %v393 = vshrl.u32 %v392, 7
      %v394 = vsub.s32 0, %v393
      %v395 = vrot.slane %v386, %v394
      %398 = vrot.lane.b32.xlu0 %v385, 96
      %v399 = vpop.permute.xlu0 %398
      %vm400 = vcmask 130048
      %v402 = vsel %vm400, %v385, 0
      %v405 = vsel %vm400, %v399, 0
      %407 = vmatprep.subr.bf16.mxu0 0
      %408 = vmatpush1.bf16.xpose.msra.mxu0 %v405
      %409 = vmatprep.subr.bf16.mxu0 0
      %410 = vmatpush1.bf16.xpose.msra.mxu0 0
      %411 = vmatprep.subr.bf16.mxu0 0
      %412 = vmatpush1.bf16.xpose.msra.mxu0 0
      %413 = vmatprep.subr.bf16.mxu0 0
      %414 = vmatpush1.bf16.xpose.msra.mxu0 0
      %415 = vmatprep.subr.bf16.mxu0 0
      %416 = vmatpush1.bf16.xpose.msra.mxu0 0
      %417 = vmatprep.subr.bf16.mxu0 0
      %418 = vmatpush1.bf16.xpose.msra.mxu0 0
      %419 = vmatprep.subr.bf16.mxu0 0
      %420 = vmatpush1.bf16.xpose.msra.mxu0 0
      %421 = vmatprep.subr.bf16.mxu0 0
      %422 = vmatpush1.bf16.xpose.msra.mxu0 0
      %423 = vmatprep.subr.bf16.mxu0 0
      %424 = vmatpush1.bf16.xpose.msra.mxu0 0
      %425 = vmatprep.subr.bf16.mxu0 0
      %426 = vmatpush1.bf16.xpose.msra.mxu0 0
      %427 = vmatprep.subr.bf16.mxu0 0
      %428 = vmatpush1.bf16.xpose.msra.mxu0 0
      %429 = vmatprep.subr.bf16.mxu0 0
      %430 = vmatpush1.bf16.xpose.msra.mxu0 0
      %431 = vmatprep.subr.bf16.mxu0 0
      %432 = vmatpush1.bf16.xpose.msra.mxu0 0
      %433 = vmatprep.subr.bf16.mxu0 0
      %434 = vmatpush1.bf16.xpose.msra.mxu0 0
      %435 = vmatprep.subr.bf16.mxu0 0
      %436 = vmatpush1.bf16.xpose.msra.mxu0 0
      %437 = vmatprep.subr.bf16.mxu0 0
      %438 = vmatpush1.bf16.xpose.msra.mxu0 0
      %439 = vmatprep.mubr.bf16.mxu0 0
      %440 = vmatmul.mubr.bf16.gmra.mrb[0].mxu0 %v402
      %v441 = vpop.f32.mrb[0].mxu0
      %v442 = vadd.f32 0.0, %v441
      %v443 = vpop.f32.mrb[0].mxu0
      %v444 = vpop.f32.mrb[0].mxu0
      %v445 = vpop.f32.mrb[0].mxu0
      %446 = vdwg.mxu0
      %v447 = vmul.f32 %v442, 0.25
      %v448 = vadd.f32 %v447, %v395
      %vm449 = vcmask 64512
      %v450 = vsel %vm449, %v448, -inf
      %451 = vmax.xlane.f32.xlu0 %v450
      %v452 = vpop.xlane.xlu0 %451
      %v453 = vsub.f32 %v448, %v452
      %v454 = vmul.f32 %v453, 1.442695
      %v455 = vpow.pop %v454
      %v456 = vsel %vm449, %v455, 0.0
      %457 = vadd.xlane.f32.xlu0 %v456
      %v458 = vpop.xlane.xlu0 %457
      %v459 = vrcp.pop %v458
      %v460 = vmul.f32 %v455, %v459
      %v461 = vpack.c.bf16 %v460, %v460
      %462 = vrot.lane.b32.xlu0 %v385, 64
      %v463 = vpop.permute.xlu0 %462
      %v465 = vsel %vm449, %v461, 0
      %vm467 = vcmask 1043456
      %v469 = vsel %vm467, %v463, 0
      %471 = vmatprep.subr.bf16.mxu0 0
      %472 = vmatpush1.bf16.msra.mxu0 %v469
      %473 = vmatprep.subr.bf16.mxu0 0
      %474 = vmatpush1.bf16.msra.mxu0 0
      %475 = vmatprep.subr.bf16.mxu0 0
      %476 = vmatpush1.bf16.msra.mxu0 0
      %477 = vmatprep.subr.bf16.mxu0 0
      %478 = vmatpush1.bf16.msra.mxu0 0
      %479 = vmatprep.subr.bf16.mxu0 0
      %480 = vmatpush1.bf16.msra.mxu0 0
      %481 = vmatprep.subr.bf16.mxu0 0
      %482 = vmatpush1.bf16.msra.mxu0 0
      %483 = vmatprep.subr.bf16.mxu0 0
      %484 = vmatpush1.bf16.msra.mxu0 0
      %485 = vmatprep.subr.bf16.mxu0 0
      %486 = vmatpush1.bf16.msra.mxu0 0
      %487 = vmatprep.subr.bf16.mxu0 0
      %488 = vmatpush1.bf16.msra.mxu0 0
      %489 = vmatprep.subr.bf16.mxu0 0
      %490 = vmatpush1.bf16.msra.mxu0 0
      %491 = vmatprep.subr.bf16.mxu0 0
      %492 = vmatpush1.bf16.msra.mxu0 0
      %493 = vmatprep.subr.bf16.mxu0 0
      %494 = vmatpush1.bf16.msra.mxu0 0
      %495 = vmatprep.subr.bf16.mxu0 0
      %496 = vmatpush1.bf16.msra.mxu0 0
      %497 = vmatprep.subr.bf16.mxu0 0
      %498 = vmatpush1.bf16.msra.mxu0 0
      %499 = vmatprep.subr.bf16.mxu0 0
      %500 = vmatpush1.bf16.msra.mxu0 0
      %501 = vmatprep.subr.bf16.mxu0 0
      %502 = vmatpush1.bf16.msra.mxu0 0
      %503 = vmatprep.mubr.bf16.mxu0 0
      %504 = vmatmul.mubr.bf16.gmra.mrb[0].mxu0 %v465
      %v505 = vpop.f32.mrb[0].mxu0
      %v506 = vadd.f32 0.0, %v505
      %v507 = vpop.f32.mrb[0].mxu0
      %v508 = vpop.f32.mrb[0].mxu0
      %v509 = vpop.f32.mrb[0].mxu0
      %510 = vdwg.mxu0
      %511 = vrot.lane.b32.xlu0 %v385, 112
      %v512 = vpop.permute.xlu0 %511
      %513 = vrot.lane.b32.xlu0 %v385, 80
      %v514 = vpop.permute.xlu0 %513
      %v516 = vsel %vm400, %v512, 0
      %v519 = vsel %vm400, %v514, 0
      %521 = vmatprep.subr.bf16.mxu0 0
      %522 = vmatpush1.bf16.xpose.msra.mxu0 %v519
      %523 = vmatprep.subr.bf16.mxu0 0
      %524 = vmatpush1.bf16.xpose.msra.mxu0 0
      %525 = vmatprep.subr.bf16.mxu0 0
      %526 = vmatpush1.bf16.xpose.msra.mxu0 0
      %527 = vmatprep.subr.bf16.mxu0 0
      %528 = vmatpush1.bf16.xpose.msra.mxu0 0
      %529 = vmatprep.subr.bf16.mxu0 0
      %530 = vmatpush1.bf16.xpose.msra.mxu0 0
      %531 = vmatprep.subr.bf16.mxu0 0
      %532 = vmatpush1.bf16.xpose.msra.mxu0 0
      %533 = vmatprep.subr.bf16.mxu0 0
      %534 = vmatpush1.bf16.xpose.msra.mxu0 0
      %535 = vmatprep.subr.bf16.mxu0 0
      %536 = vmatpush1.bf16.xpose.msra.mxu0 0
      %537 = vmatprep.subr.bf16.mxu0 0
      %538 = vmatpush1.bf16.xpose.msra.mxu0 0
      %539 = vmatprep.subr.bf16.mxu0 0
      %540 = vmatpush1.bf16.xpose.msra.mxu0 0
      %541 = vmatprep.subr.bf16.mxu0 0
      %542 = vmatpush1.bf16.xpose.msra.mxu0 0
      %543 = vmatprep.subr.bf16.mxu0 0
      %544 = vmatpush1.bf16.xpose.msra.mxu0 0
      %545 = vmatprep.subr.bf16.mxu0 0
      %546 = vmatpush1.bf16.xpose.msra.mxu0 0
      %547 = vmatprep.subr.bf16.mxu0 0
      %548 = vmatpush1.bf16.xpose.msra.mxu0 0
      %549 = vmatprep.subr.bf16.mxu0 0
      %550 = vmatpush1.bf16.xpose.msra.mxu0 0
      %551 = vmatprep.subr.bf16.mxu0 0
      %552 = vmatpush1.bf16.xpose.msra.mxu0 0
      %553 = vmatprep.mubr.bf16.mxu0 0
      %554 = vmatmul.mubr.bf16.gmra.mrb[0].mxu0 %v516
      %v555 = vpop.f32.mrb[0].mxu0
      %v556 = vadd.f32 0.0, %v555
      %v557 = vpop.f32.mrb[0].mxu0
      %v558 = vpop.f32.mrb[0].mxu0
      %v559 = vpop.f32.mrb[0].mxu0
      %560 = vdwg.mxu0
      %v561 = vmul.f32 %v556, 0.25
      %v562 = vadd.f32 %v561, %v395
      %v563 = vsel %vm449, %v562, -inf
      %564 = vmax.xlane.f32.xlu0 %v563
      %v565 = vpop.xlane.xlu0 %564
      %v566 = vsub.f32 %v562, %v565
      %v567 = vmul.f32 %v566, 1.442695
      %v568 = vpow.pop %v567
      %v569 = vsel %vm449, %v568, 0.0
      %570 = vadd.xlane.f32.xlu0 %v569
      %v571 = vpop.xlane.xlu0 %570
      %v572 = vrcp.pop %v571
      %v573 = vmul.f32 %v568, %v572
      %v574 = vpack.c.bf16 %v573, %v573
      %575 = vrot.lane.b32.xlu0 %v385, 48
      %v576 = vpop.permute.xlu0 %575
      %v578 = vsel %vm449, %v574, 0
      %v581 = vsel %vm467, %v576, 0
      %583 = vmatprep.subr.bf16.mxu0 0
      %584 = vmatpush1.bf16.msra.mxu0 %v581
      %585 = vmatprep.subr.bf16.mxu0 0
      %586 = vmatpush1.bf16.msra.mxu0 0
      %587 = vmatprep.subr.bf16.mxu0 0
      %588 = vmatpush1.bf16.msra.mxu0 0
      %589 = vmatprep.subr.bf16.mxu0 0
      %590 = vmatpush1.bf16.msra.mxu0 0
      %591 = vmatprep.subr.bf16.mxu0 0
      %592 = vmatpush1.bf16.msra.mxu0 0
      %593 = vmatprep.subr.bf16.mxu0 0
      %594 = vmatpush1.bf16.msra.mxu0 0
      %595 = vmatprep.subr.bf16.mxu0 0
      %596 = vmatpush1.bf16.msra.mxu0 0
      %597 = vmatprep.subr.bf16.mxu0 0
      %598 = vmatpush1.bf16.msra.mxu0 0
      %599 = vmatprep.subr.bf16.mxu0 0
      %600 = vmatpush1.bf16.msra.mxu0 0
      %601 = vmatprep.subr.bf16.mxu0 0
      %602 = vmatpush1.bf16.msra.mxu0 0
      %603 = vmatprep.subr.bf16.mxu0 0
      %604 = vmatpush1.bf16.msra.mxu0 0
      %605 = vmatprep.subr.bf16.mxu0 0
      %606 = vmatpush1.bf16.msra.mxu0 0
      %607 = vmatprep.subr.bf16.mxu0 0
      %608 = vmatpush1.bf16.msra.mxu0 0
      %609 = vmatprep.subr.bf16.mxu0 0
      %610 = vmatpush1.bf16.msra.mxu0 0
      %611 = vmatprep.subr.bf16.mxu0 0
      %612 = vmatpush1.bf16.msra.mxu0 0
      %613 = vmatprep.subr.bf16.mxu0 0
      %614 = vmatpush1.bf16.msra.mxu0 0
      %615 = vmatprep.mubr.bf16.mxu0 0
      %616 = vmatmul.mubr.bf16.gmra.mrb[0].mxu0 %v578
      %v617 = vpop.f32.mrb[0].mxu0
      %v618 = vadd.f32 0.0, %v617
      %v619 = vpop.f32.mrb[0].mxu0
      %v620 = vpop.f32.mrb[0].mxu0
      %v621 = vpop.f32.mrb[0].mxu0
      %622 = vdwg.mxu0
      %624 = vrot.lane.b32.xlu0 %v618, 16
      %v625 = vpop.permute.xlu0 %624
      %v627 = vsel %vm400, %v506, %v625
      %v628 = vpack.c.bf16 %v627, %v627
      %v633 = vunpack.c.l.b16 %v387
      %v634 = vunpack.c.l.b16 %v388
      %v635 = vunpack.c.l.b16 %v389
      %v636 = vunpack.c.l.b16 %v390
      %v637 = vpack.c.b16 %v634, %v633
      %v638 = vpack.c.b16 %v636, %v635
      %v642 = vsel %vm341, %v628, 0
      %644 = vmatprep.subr.bf16.mxu0 0
      %645 = vmatpush1.bf16.msra.mxu0 %v637
      %646 = vmatprep.subr.bf16.mxu0 0
      %647 = vmatpush1.bf16.msra.mxu0 %v638
      %648 = vmatprep.subr.bf16.mxu0 0
      %649 = vmatpush1.bf16.msra.mxu0 0
      %650 = vmatprep.subr.bf16.mxu0 0
      %651 = vmatpush1.bf16.msra.mxu0 0
      %652 = vmatprep.subr.bf16.mxu0 0
      %653 = vmatpush1.bf16.msra.mxu0 0
      %654 = vmatprep.subr.bf16.mxu0 0
      %655 = vmatpush1.bf16.msra.mxu0 0
      %656 = vmatprep.subr.bf16.mxu0 0
      %657 = vmatpush1.bf16.msra.mxu0 0
      %658 = vmatprep.subr.bf16.mxu0 0
      %659 = vmatpush1.bf16.msra.mxu0 0
      %660 = vmatprep.subr.bf16.mxu0 0
      %661 = vmatpush1.bf16.msra.mxu0 0
      %662 = vmatprep.subr.bf16.mxu0 0
      %663 = vmatpush1.bf16.msra.mxu0 0
      %664 = vmatprep.subr.bf16.mxu0 0
      %665 = vmatpush1.bf16.msra.mxu0 0
      %666 = vmatprep.subr.bf16.mxu0 0
      %667 = vmatpush1.bf16.msra.mxu0 0
      %668 = vmatprep.subr.bf16.mxu0 0
      %669 = vmatpush1.bf16.msra.mxu0 0
      %670 = vmatprep.subr.bf16.mxu0 0
      %671 = vmatpush1.bf16.msra.mxu0 0
      %672 = vmatprep.subr.bf16.mxu0 0
      %673 = vmatpush1.bf16.msra.mxu0 0
      %674 = vmatprep.subr.bf16.mxu0 0
      %675 = vmatpush1.bf16.msra.mxu0 0
      %676 = vmatprep.mubr.bf16.mxu0 0
      %677 = vmatmul.mubr.bf16.gmra.mrb[0].mxu0 %v642
      %v678 = vpop.f32.mrb[0].mxu0
      %v679 = vadd.f32 0.0, %v678
      %v680 = vpop.f32.mrb[0].mxu0
      %v681 = vpop.f32.mrb[0].mxu0
      %v682 = vpop.f32.mrb[0].mxu0
      %683 = vdwg.mxu0
      %v684 = vadd.f32 %v316, %v679
      %v685 = vld [vmem:[%s5] sm:$0x1]
      %v687 = vlaneseq
      %v688 = vshrl.u32 %v687, 7
      %v689 = vsub.s32 0, %v688
      %v690 = vrot.slane %v685, %v689
      %v692 = vadd.f32 %v684, %v690
      %v693 = vsel %vm341, %v692, 0.0
      %694 = vadd.xlane.f32.xlu0 %v693
      %v695 = vpop.xlane.xlu0 %694
      %v696 = vrcp.pop 32.0
      %v697 = vmul.f32 %v695, %v696
      %v698 = vsub.f32 %v692, %v697
      %v699 = vmul.f32 %v698, %v698
      %v700 = vsel %vm341, %v699, 0.0
      %701 = vadd.xlane.f32.xlu0 %v700
      %v702 = vpop.xlane.xlu0 %701
      %v703 = vmul.f32 %v702, %v696
      %v704 = vadd.f32 %v703, 1e-05
      %v705 = vrsqrt.pop %v704
      %v706 = vmul.f32 %v698, %v705
      %v707 = vld [vmem:[%s6] sm:$0x1]
      %v709 = vlaneseq
      %v710 = vshrl.u32 %v709, 7
      %v711 = vsub.s32 0, %v710
      %v712 = vrot.slane %v707, %v711
      %v714 = vmul.f32 %v706, %v712
      %v715 = vld [vmem:[%s7] sm:$0x1]
      %v717 = vlaneseq
      %v718 = vshrl.u32 %v717, 7
      %v719 = vsub.s32 0, %v718
      %v720 = vrot.slane %v715, %v719
      %v722 = vadd.f32 %v714, %v720
      %723 = vst.msk [vmem:[%s314] sm:$0xff] %vm341, %v722
      %p724 = scmp.lt.s32.totalorder %s19, 1
      %s725 = scalar_select %p724, %s19, 1
      %s726 = smul.addr %s725, 8
      %s727 = scalar_lea.vmem %s8, %s726
      // Predicated region
      $region53: #{_generate_jit.6} parent=51 // pred_check
        %p728 = pneg %p215
      $region54: #{_generate_jit.6} parent=51 // pred_check_branch
        %730 = sbr.rel (%p728) target = $region56
      $region55: #{_generate_jit.6} parent=51 // pred_region
        _
      $region56: #{_generate_jit.6} parent=51 // pred_fallthru
        _
    $region52: #{_generate_jit.6} parent=5 // pred_fallthru
      _
    %p731 = scmp.le.s32.totalorder 2, %s14
    // Predicated region
    $region57: #{_generate_jit.6} parent=5 // pred_check
      %p732 = pneg %p731
    $region58: #{_generate_jit.6} parent=5 // pred_check_branch
      %734 = sbr.rel (%p732) target = $region60
    $region59: #{_generate_jit.6} parent=5 // pred_region
      %s735 = ssub.s32 %s14, 2
      // Predicated region
      $region61: #{_generate_jit.6} parent=59 // pred_check
        %p736 = pneg %p221
      $region62: #{_generate_jit.6} parent=59 // pred_check_branch
        %738 = sbr.rel (%p736) target = $region64
      $region63: #{_generate_jit.6} parent=59 // pred_region
        %p739 = scmp.lt.s32.totalorder %s20, 1
        %s740 = scalar_select %p739, %s20, 1
        %s741 = smul.addr %s740, 8
        %s742 = scalar_lea.vmem %s8, %s741
      $region64: #{_generate_jit.6} parent=59 // pred_fallthru
        _
    $region60: #{_generate_jit.6} parent=5 // pred_fallthru
      _
  $region6: #{_generate_jit.6} parent=0 // loop_footer
    %s18 = sadd.s32 1, %s14
  $region7: #{_generate_jit.6} parent=0 // loop_footer_branch
    %13 = sbr.rel target = $region3
  $region8: #{_generate_jit.6} parent=0 // loop_exit
    _

// kernel: _generate_jit.7
$region0: #{_generate_jit.7}
  #allocation0 [shape = 'u32[]', space=smem, size = 0x4, offset = 0x4, fixed_abs, tag = 'smem constant byte address 0x4 - core index']
  #allocation1 [shape = 'u32[144,128]{1,0:T(1,128)}', space=vmem, size = 0x12000, scoped, tag = 'internal scratch']
  %s0 = inlined_call_operand.vmem [shape: f32[16,32], index: 0, kind: input, shape index: {}]
  %s1 = inlined_call_operand.vmem [shape: bf16[32,64], index: 1, kind: input, shape index: {}]
  %s2 = inlined_call_operand.vmem [shape: f32[1,64], index: 2, kind: input, shape index: {}]
  %s3 = inlined_call_operand.vmem [shape: bf16[64,32], index: 3, kind: input, shape index: {}]
  %s4 = inlined_call_operand.vmem [shape: f32[1,32], index: 4, kind: input, shape index: {}]
  %s5 = inlined_call_operand.vmem [shape: f32[1,32], index: 5, kind: input, shape index: {}]
  %s6 = inlined_call_operand.vmem [shape: f32[1,32], index: 6, kind: input, shape index: {}]
  %s7 = inlined_call_operand.vmem [shape: f32[16,32], index: 7, kind: output, shape index: {}]
  %s8 = sld [smem:[#allocation0]]
  $region38: #{_generate_jit.7} parent=0
    _
  %s10 = ssub.s32 1, %s8
  %s11 = scalar_select 0, %s10, %s8
  // Predicated region
  $region2: #{_generate_jit.7} parent=0 // pred_check
    _
  $region3: #{_generate_jit.7} parent=0 // pred_check_branch
    %13 = sbr.rel (0) target = $region5
  $region4: #{_generate_jit.7} parent=0 // pred_region
    _
  $region5: #{_generate_jit.7} parent=0 // pred_fallthru
    _
  // Predicated region
  $region6: #{_generate_jit.7} parent=0 // pred_check
    _
  $region7: #{_generate_jit.7} parent=0 // pred_check_branch
    %15 = sbr.rel (0) target = $region9
  $region8: #{_generate_jit.7} parent=0 // pred_region
    _
  $region9: #{_generate_jit.7} parent=0 // pred_fallthru
    _
  // Predicated region
  $region10: #{_generate_jit.7} parent=0 // pred_check
    _
  $region11: #{_generate_jit.7} parent=0 // pred_check_branch
    %17 = sbr.rel (0) target = $region13
  $region12: #{_generate_jit.7} parent=0 // pred_region
    _
  $region13: #{_generate_jit.7} parent=0 // pred_fallthru
    _
  // Predicated region
  $region14: #{_generate_jit.7} parent=0 // pred_check
    _
  $region15: #{_generate_jit.7} parent=0 // pred_check_branch
    %19 = sbr.rel (0) target = $region17
  $region16: #{_generate_jit.7} parent=0 // pred_region
    _
  $region17: #{_generate_jit.7} parent=0 // pred_fallthru
    _
  // Predicated region
  $region18: #{_generate_jit.7} parent=0 // pred_check
    _
  $region19: #{_generate_jit.7} parent=0 // pred_check_branch
    %21 = sbr.rel (0) target = $region21
  $region20: #{_generate_jit.7} parent=0 // pred_region
    _
  $region21: #{_generate_jit.7} parent=0 // pred_fallthru
    _
  // Predicated region
  $region22: #{_generate_jit.7} parent=0 // pred_check
    _
  $region23: #{_generate_jit.7} parent=0 // pred_check_branch
    %23 = sbr.rel (0) target = $region25
  $region24: #{_generate_jit.7} parent=0 // pred_region
    _
  $region25: #{_generate_jit.7} parent=0 // pred_fallthru
    _
  // Predicated region
  $region26: #{_generate_jit.7} parent=0 // pred_check
    _
  $region27: #{_generate_jit.7} parent=0 // pred_check_branch
    %25 = sbr.rel (0) target = $region29
  $region28: #{_generate_jit.7} parent=0 // pred_region
    _
  $region29: #{_generate_jit.7} parent=0 // pred_fallthru
    _
  %v27 = vld [vmem:[%s0] sm:$0xff]
  %v28 = vld [vmem:[%s0 + $0x8] sm:$0xff]
  %v29 = vpack.c.bf16 %v28, %v27
  %v30 = vld [vmem:[%s1] sm:$0xf]
  %v31 = vld [vmem:[%s1 + $0x4] sm:$0xf]
  %v32 = vld [vmem:[%s1 + $0x8] sm:$0xf]
  %v33 = vld [vmem:[%s1 + $0xc] sm:$0xf]
  %v34 = vld [vmem:[%s2] sm:$0x1]
  %v36 = vlaneseq
  %v37 = vshrl.u32 %v36, 7
  %v38 = vsub.s32 0, %v37
  %v39 = vrot.slane %v34, %v38
  %v45 = vunpack.c.l.b16 %v30
  %v46 = vunpack.c.l.b16 %v31
  %v47 = vunpack.c.l.b16 %v32
  %v48 = vunpack.c.l.b16 %v33
  %v49 = vpack.c.b16 %v46, %v45
  %v50 = vpack.c.b16 %v48, %v47
  %vm53 = vcmask 261120
  %v55 = vsel %vm53, %v29, 0
  %57 = vmatprep.subr.bf16.mxu0 0
  %58 = vmatpush1.bf16.msra.mxu0 %v49
  %59 = vmatprep.subr.bf16.mxu0 0
  %60 = vmatpush1.bf16.msra.mxu0 %v50
  %61 = vmatprep.subr.bf16.mxu0 0
  %62 = vmatpush1.bf16.msra.mxu0 0
  %63 = vmatprep.subr.bf16.mxu0 0
  %64 = vmatpush1.bf16.msra.mxu0 0
  %65 = vmatprep.subr.bf16.mxu0 0
  %66 = vmatpush1.bf16.msra.mxu0 0
  %67 = vmatprep.subr.bf16.mxu0 0
  %68 = vmatpush1.bf16.msra.mxu0 0
  %69 = vmatprep.subr.bf16.mxu0 0
  %70 = vmatpush1.bf16.msra.mxu0 0
  %71 = vmatprep.subr.bf16.mxu0 0
  %72 = vmatpush1.bf16.msra.mxu0 0
  %73 = vmatprep.subr.bf16.mxu0 0
  %74 = vmatpush1.bf16.msra.mxu0 0
  %75 = vmatprep.subr.bf16.mxu0 0
  %76 = vmatpush1.bf16.msra.mxu0 0
  %77 = vmatprep.subr.bf16.mxu0 0
  %78 = vmatpush1.bf16.msra.mxu0 0
  %79 = vmatprep.subr.bf16.mxu0 0
  %80 = vmatpush1.bf16.msra.mxu0 0
  %81 = vmatprep.subr.bf16.mxu0 0
  %82 = vmatpush1.bf16.msra.mxu0 0
  %83 = vmatprep.subr.bf16.mxu0 0
  %84 = vmatpush1.bf16.msra.mxu0 0
  %85 = vmatprep.subr.bf16.mxu0 0
  %86 = vmatpush1.bf16.msra.mxu0 0
  %87 = vmatprep.subr.bf16.mxu0 0
  %88 = vmatpush1.bf16.msra.mxu0 0
  %89 = vmatprep.mubr.bf16.mxu0 0
  %90 = vmatmul.mubr.bf16.gmra.mrb[0].mxu0 %v55
  %v91 = vpop.f32.mrb[0].mxu0
  %v92 = vadd.f32 %v39, %v91
  %v93 = vpop.f32.mrb[0].mxu0
  %v94 = vpop.f32.mrb[0].mxu0
  %v95 = vadd.f32 %v39, %v94
  %v96 = vpop.f32.mrb[0].mxu0
  %97 = vdwg.mxu0
  %v98 = vmax.f32 %v92, 0.0
  %v99 = vmax.f32 %v95, 0.0
  %v100 = vpack.c.bf16 %v99, %v98
  %v101 = vld [vmem:[%s3] sm:$0xf]
  %v102 = vld [vmem:[%s3 + $0x4] sm:$0xf]
  %v103 = vld [vmem:[%s3 + $0x8] sm:$0xf]
  %v104 = vld [vmem:[%s3 + $0xc] sm:$0xf]
  %v105 = vld [vmem:[%s3 + $0x10] sm:$0xf]
  %v106 = vld [vmem:[%s3 + $0x14] sm:$0xf]
  %v107 = vld [vmem:[%s3 + $0x18] sm:$0xf]
  %v108 = vld [vmem:[%s3 + $0x1c] sm:$0xf]
  %v109 = vld [vmem:[%s4] sm:$0x1]
  %v111 = vlaneseq
  %v112 = vshrl.u32 %v111, 7
  %v113 = vsub.s32 0, %v112
  %v114 = vrot.slane %v109, %v113
  %v124 = vunpack.c.l.b16 %v101
  %v125 = vunpack.c.l.b16 %v102
  %v126 = vunpack.c.l.b16 %v103
  %v127 = vunpack.c.l.b16 %v104
  %v128 = vunpack.c.l.b16 %v105
  %v129 = vunpack.c.l.b16 %v106
  %v130 = vunpack.c.l.b16 %v107
  %v131 = vunpack.c.l.b16 %v108
  %v132 = vpack.c.b16 %v125, %v124
  %v133 = vpack.c.b16 %v127, %v126
  %v134 = vpack.c.b16 %v129, %v128
  %v135 = vpack.c.b16 %v131, %v130
  %vm140 = vcmask 523264
  %v142 = vsel %vm140, %v100, 0
  %144 = vmatprep.subr.bf16.mxu0 0
  %145 = vmatpush1.bf16.msra.mxu0 %v132
  %146 = vmatprep.subr.bf16.mxu0 0
  %147 = vmatpush1.bf16.msra.mxu0 %v133
  %148 = vmatprep.subr.bf16.mxu0 0
  %149 = vmatpush1.bf16.msra.mxu0 %v134
  %150 = vmatprep.subr.bf16.mxu0 0
  %151 = vmatpush1.bf16.msra.mxu0 %v135
  %152 = vmatprep.subr.bf16.mxu0 0
  %153 = vmatpush1.bf16.msra.mxu0 0
  %154 = vmatprep.subr.bf16.mxu0 0
  %155 = vmatpush1.bf16.msra.mxu0 0
  %156 = vmatprep.subr.bf16.mxu0 0
  %157 = vmatpush1.bf16.msra.mxu0 0
  %158 = vmatprep.subr.bf16.mxu0 0
  %159 = vmatpush1.bf16.msra.mxu0 0
  %160 = vmatprep.subr.bf16.mxu0 0
  %161 = vmatpush1.bf16.msra.mxu0 0
  %162 = vmatprep.subr.bf16.mxu0 0
  %163 = vmatpush1.bf16.msra.mxu0 0
  %164 = vmatprep.subr.bf16.mxu0 0
  %165 = vmatpush1.bf16.msra.mxu0 0
  %166 = vmatprep.subr.bf16.mxu0 0
  %167 = vmatpush1.bf16.msra.mxu0 0
  %168 = vmatprep.subr.bf16.mxu0 0
  %169 = vmatpush1.bf16.msra.mxu0 0
  %170 = vmatprep.subr.bf16.mxu0 0
  %171 = vmatpush1.bf16.msra.mxu0 0
  %172 = vmatprep.subr.bf16.mxu0 0
  %173 = vmatpush1.bf16.msra.mxu0 0
  %174 = vmatprep.subr.bf16.mxu0 0
  %175 = vmatpush1.bf16.msra.mxu0 0
  %176 = vmatprep.mubr.bf16.mxu0 0
  %177 = vmatmul.mubr.bf16.gmra.mrb[0].mxu0 %v142
  %v178 = vpop.f32.mrb[0].mxu0
  %v179 = vadd.f32 %v114, %v178
  %v180 = vpop.f32.mrb[0].mxu0
  %v181 = vpop.f32.mrb[0].mxu0
  %v182 = vadd.f32 %v114, %v181
  %v183 = vpop.f32.mrb[0].mxu0
  %184 = vdwg.mxu0
  %v185 = vadd.f32 %v27, %v179
  %v186 = vadd.f32 %v28, %v182
  %v187 = vsel %vm53, %v185, 0.0
  %188 = vadd.xlane.f32.xlu0 %v187
  %v189 = vpop.xlane.xlu0 %188
  %v190 = vsel %vm53, %v186, 0.0
  %191 = vadd.xlane.f32.xlu0 %v190
  %v192 = vpop.xlane.xlu0 %191
  %v193 = vrcp.pop 32.0
  %v194 = vmul.f32 %v189, %v193
  %v195 = vmul.f32 %v192, %v193
  %v196 = vsub.f32 %v185, %v194
  %v197 = vsub.f32 %v186, %v195
  %v198 = vmul.f32 %v196, %v196
  %v199 = vmul.f32 %v197, %v197
  %v200 = vsel %vm53, %v198, 0.0
  %201 = vadd.xlane.f32.xlu0 %v200
  %v202 = vpop.xlane.xlu0 %201
  %v203 = vsel %vm53, %v199, 0.0
  %204 = vadd.xlane.f32.xlu0 %v203
  %v205 = vpop.xlane.xlu0 %204
  %v206 = vmul.f32 %v202, %v193
  %v207 = vmul.f32 %v205, %v193
  %v208 = vadd.f32 %v206, 1e-05
  %v209 = vadd.f32 %v207, 1e-05
  %v210 = vrsqrt.pop %v208
  %v211 = vrsqrt.pop %v209
  %v212 = vmul.f32 %v196, %v210
  %v213 = vmul.f32 %v197, %v211
  %v214 = vld [vmem:[%s5] sm:$0x1]
  %v216 = vlaneseq
  %v217 = vshrl.u32 %v216, 7
  %v218 = vsub.s32 0, %v217
  %v219 = vrot.slane %v214, %v218
  %v221 = vmul.f32 %v212, %v219
  %v222 = vmul.f32 %v213, %v219
  %v223 = vld [vmem:[%s6] sm:$0x1]
  %v225 = vlaneseq
  %v226 = vshrl.u32 %v225, 7
  %v227 = vsub.s32 0, %v226
  %v228 = vrot.slane %v223, %v227
  %v230 = vadd.f32 %v221, %v228
  %v231 = vadd.f32 %v222, %v228
  %232 = vst.msk [vmem:[%s7] sm:$0xff] %vm53, %v230
  %233 = vst.msk [vmem:[%s7 + $0x8] sm:$0xff] %vm53, %v231
  // Predicated region
  $region30: #{_generate_jit.7} parent=0 // pred_check
    _
  $region31: #{_generate_jit.7} parent=0 // pred_check_branch
    %235 = sbr.rel (0) target = $region33
  $region32: #{_generate_jit.7} parent=0 // pred_region
    _
  $region33: #{_generate_jit.7} parent=0 // pred_fallthru
    _
  // Predicated region
  $region34: #{_generate_jit.7} parent=0 // pred_check
    _
  $region35: #{_generate_jit.7} parent=0 // pred_check_branch
    %237 = sbr.rel (0) target = $region37
  $region36: #{_generate_jit.7} parent=0 // pred_region
    _
  $region37: #{_generate_jit.7} parent=0 // pred_fallthru
    _

// kernel: closed_call.83
$region0: #{closed_call.83}
  #allocation0 [shape = 'u32[]', space=smem, size = 0x4, offset = 0x4, fixed_abs, tag = 'smem constant byte address 0x4 - core index']
  #allocation1 [shape = 'u32[144,128]{1,0:T(1,128)}', space=vmem, size = 0x12000, scoped, tag = 'internal scratch']
  %s0 = inlined_call_operand.vmem [shape: f32[2,8,32], index: 0, kind: input, shape index: {}]
  %s1 = inlined_call_operand.vmem [shape: bf16[2,8,64], index: 1, kind: input, shape index: {}]
  %s2 = inlined_call_operand.vmem [shape: f32[2,1,8], index: 2, kind: input, shape index: {}]
  %s3 = inlined_call_operand.vmem [shape: bf16[32,32], index: 3, kind: input, shape index: {}]
  %s4 = inlined_call_operand.vmem [shape: f32[1,32], index: 4, kind: input, shape index: {}]
  %s5 = inlined_call_operand.vmem [shape: bf16[32,32], index: 5, kind: input, shape index: {}]
  %s6 = inlined_call_operand.vmem [shape: f32[1,32], index: 6, kind: input, shape index: {}]
  %s7 = inlined_call_operand.vmem [shape: f32[1,32], index: 7, kind: input, shape index: {}]
  %s8 = inlined_call_operand.vmem [shape: f32[1,32], index: 8, kind: input, shape index: {}]
  %s9 = inlined_call_operand.vmem [shape: f32[2,8,32], index: 9, kind: output, shape index: {}]
  %s10 = sld [smem:[#allocation0]]
  $region69: #{closed_call.83} parent=0
    _
  %s12 = ssub.s32 1, %s10
  %s13 = scalar_select 0, %s12, %s10
  loop: start=0, step=1, limit=4
  $region2: #{closed_call.83} parent=0 // loop_pre_header
    _
  $region3: #{closed_call.83} parent=0 // loop_header
    %s15 = sphi 0, %s19
    %p16 = scmp.ge.s32.totalorder %s15, 4
    %s25 = sphi 0, %s27
    %s28 = sphi 0, %s25
    %s29 = sphi 0, %s28
    %s45 = sphi 0, %s29
    %s51 = sphi 0, %s53
    %s54 = sphi 0, %s51
    %s55 = sphi 0, %s54
    %s71 = sphi 0, %s55
    %s77 = sphi 0, %s79
    %s80 = sphi 0, %s77
    %s81 = sphi 0, %s80
    %s97 = sphi 0, %s81
    %s101 = sphi 0, %s101
    %s103 = sphi 0, %s101
    %s104 = sphi 0, %s103
    %s118 = sphi 0, %s104
    %s122 = sphi 0, %s122
    %s124 = sphi 0, %s122
    %s125 = sphi 0, %s124
    %s139 = sphi 0, %s125
    %s143 = sphi 0, %s143
    %s145 = sphi 0, %s143
    %s146 = sphi 0, %s145
    %s160 = sphi 0, %s146
    %s164 = sphi 0, %s164
    %s166 = sphi 0, %s164
    %s167 = sphi 0, %s166
    %s181 = sphi 0, %s167
    %s185 = sphi 0, %s185
    %s187 = sphi 0, %s185
    %s188 = sphi 0, %s187
    %s202 = sphi 0, %s188
    %s206 = sphi 0, %s206
    %s208 = sphi 0, %s206
    %s209 = sphi 0, %s208
    %s223 = sphi 0, %s209
    %s229 = sphi 0, %s231
    %s232 = sphi 0, %s229
    %s233 = sphi 0, %s232
    %s249 = sphi 0, %s233
  $region4: #{closed_call.83} parent=0 // loop_header_branch
    %18 = sbr.rel (%p16) target = $region8
  $region5: #{closed_call.83} parent=0 // loop_body
    %s20 = ssub.s32 %s15, 1
    %s21 = ssub.s32 %s15, 2
    %s22 = sadd.s32 %s15, 1
    %s23 = ssub.s32 %s15, %s22
    %p24 = scmp.eq.s32.totalorder %s23, 0
    %s26 = sadd.s32 %s25, 1
    %s27 = scalar_select %p24, %s25, %s26
    %p30 = pneg %p24
    %p31 = scmp.eq.s32.totalorder %s15, 1
    %p32 = por %p30, %p31
    %p33 = scmp.ne.s32.totalorder %s25, %s28
    %p34 = scmp.eq.s32.totalorder %s15, 0
    %p35 = por %p33, %p34
    %p36 = scmp.ne.s32.totalorder %s25, %s28
    %p37 = scmp.eq.s32.totalorder %s20, 1
    %p38 = por %p36, %p37
    %p39 = scmp.ne.s32.totalorder %s28, %s29
    %p40 = scmp.eq.s32.totalorder %s20, 0
    %p41 = por %p39, %p40
    %p42 = scmp.ne.s32.totalorder %s28, %s29
    %p43 = scmp.eq.s32.totalorder %s21, 1
    %p44 = por %p42, %p43
    %p46 = scmp.ne.s32.totalorder %s29, %s45
    %p47 = scmp.eq.s32.totalorder %s21, 0
    %p48 = por %p46, %p47
    %s49 = ssub.s32 %s15, %s22
    %p50 = scmp.eq.s32.totalorder %s49, 0
    %s52 = sadd.s32 %s51, 1
    %s53 = scalar_select %p50, %s51, %s52
    %p56 = pneg %p50
    %p57 = scmp.eq.s32.totalorder %s15, 1
    %p58 = por %p56, %p57
    %p59 = scmp.ne.s32.totalorder %s51, %s54
    %p60 = scmp.eq.s32.totalorder %s15, 0
    %p61 = por %p59, %p60
    %p62 = scmp.ne.s32.totalorder %s51, %s54
    %p63 = scmp.eq.s32.totalorder %s20, 1
    %p64 = por %p62, %p63
    %p65 = scmp.ne.s32.totalorder %s54, %s55
    %p66 = scmp.eq.s32.totalorder %s20, 0
    %p67 = por %p65, %p66
    %p68 = scmp.ne.s32.totalorder %s54, %s55
    %p69 = scmp.eq.s32.totalorder %s21, 1
    %p70 = por %p68, %p69
    %p72 = scmp.ne.s32.totalorder %s55, %s71
    %p73 = scmp.eq.s32.totalorder %s21, 0
    %p74 = por %p72, %p73
    %s75 = ssub.s32 %s15, %s22
    %p76 = scmp.eq.s32.totalorder %s75, 0
    %s78 = sadd.s32 %s77, 1
    %s79 = scalar_select %p76, %s77, %s78
    %p82 = pneg %p76
    %p83 = scmp.eq.s32.totalorder %s15, 1
    %p84 = por %p82, %p83
    %p85 = scmp.ne.s32.totalorder %s77, %s80
    %p86 = scmp.eq.s32.totalorder %s15, 0
    %p87 = por %p85, %p86
    %p88 = scmp.ne.s32.totalorder %s77, %s80
    %p89 = scmp.eq.s32.totalorder %s20, 1
    %p90 = por %p88, %p89
    %p91 = scmp.ne.s32.totalorder %s80, %s81
    %p92 = scmp.eq.s32.totalorder %s20, 0
    %p93 = por %p91, %p92
    %p94 = scmp.ne.s32.totalorder %s80, %s81
    %p95 = scmp.eq.s32.totalorder %s21, 1
    %p96 = por %p94, %p95
    %p98 = scmp.ne.s32.totalorder %s81, %s97
    %p99 = scmp.eq.s32.totalorder %s21, 0
    %p100 = por %p98, %p99
    %s102 = sadd.s32 %s101, 1
    %p105 = scmp.eq.s32.totalorder %s15, 1
    %p106 = scmp.ne.s32.totalorder %s101, %s103
    %p107 = scmp.eq.s32.totalorder %s15, 0
    %p108 = por %p106, %p107
    %p109 = scmp.ne.s32.totalorder %s101, %s103
    %p110 = scmp.eq.s32.totalorder %s20, 1
    %p111 = por %p109, %p110
    %p112 = scmp.ne.s32.totalorder %s103, %s104
    %p113 = scmp.eq.s32.totalorder %s20, 0
    %p114 = por %p112, %p113
    %p115 = scmp.ne.s32.totalorder %s103, %s104
    %p116 = scmp.eq.s32.totalorder %s21, 1
    %p117 = por %p115, %p116
    %p119 = scmp.ne.s32.totalorder %s104, %s118
    %p120 = scmp.eq.s32.totalorder %s21, 0
    %p121 = por %p119, %p120
    %s123 = sadd.s32 %s122, 1
    %p126 = scmp.eq.s32.totalorder %s15, 1
    %p127 = scmp.ne.s32.totalorder %s122, %s124
    %p128 = scmp.eq.s32.totalorder %s15, 0
    %p129 = por %p127, %p128
    %p130 = scmp.ne.s32.totalorder %s122, %s124
    %p131 = scmp.eq.s32.totalorder %s20, 1
    %p132 = por %p130, %p131
    %p133 = scmp.ne.s32.totalorder %s124, %s125
    %p134 = scmp.eq.s32.totalorder %s20, 0
    %p135 = por %p133, %p134
    %p136 = scmp.ne.s32.totalorder %s124, %s125
    %p137 = scmp.eq.s32.totalorder %s21, 1
    %p138 = por %p136, %p137
    %p140 = scmp.ne.s32.totalorder %s125, %s139
    %p141 = scmp.eq.s32.totalorder %s21, 0
    %p142 = por %p140, %p141
    %s144 = sadd.s32 %s143, 1
    %p147 = scmp.eq.s32.totalorder %s15, 1
    %p148 = scmp.ne.s32.totalorder %s143, %s145
    %p149 = scmp.eq.s32.totalorder %s15, 0
    %p150 = por %p148, %p149
    %p151 = scmp.ne.s32.totalorder %s143, %s145
    %p152 = scmp.eq.s32.totalorder %s20, 1
    %p153 = por %p151, %p152
    %p154 = scmp.ne.s32.totalorder %s145, %s146
    %p155 = scmp.eq.s32.totalorder %s20, 0
    %p156 = por %p154, %p155
    %p157 = scmp.ne.s32.totalorder %s145, %s146
    %p158 = scmp.eq.s32.totalorder %s21, 1
    %p159 = por %p157, %p158
    %p161 = scmp.ne.s32.totalorder %s146, %s160
    %p162 = scmp.eq.s32.totalorder %s21, 0
    %p163 = por %p161, %p162
    %s165 = sadd.s32 %s164, 1
    %p168 = scmp.eq.s32.totalorder %s15, 1
    %p169 = scmp.ne.s32.totalorder %s164, %s166
    %p170 = scmp.eq.s32.totalorder %s15, 0
    %p171 = por %p169, %p170
    %p172 = scmp.ne.s32.totalorder %s164, %s166
    %p173 = scmp.eq.s32.totalorder %s20, 1
    %p174 = por %p172, %p173
    %p175 = scmp.ne.s32.totalorder %s166, %s167
    %p176 = scmp.eq.s32.totalorder %s20, 0
    %p177 = por %p175, %p176
    %p178 = scmp.ne.s32.totalorder %s166, %s167
    %p179 = scmp.eq.s32.totalorder %s21, 1
    %p180 = por %p178, %p179
    %p182 = scmp.ne.s32.totalorder %s167, %s181
    %p183 = scmp.eq.s32.totalorder %s21, 0
    %p184 = por %p182, %p183
    %s186 = sadd.s32 %s185, 1
    %p189 = scmp.eq.s32.totalorder %s15, 1
    %p190 = scmp.ne.s32.totalorder %s185, %s187
    %p191 = scmp.eq.s32.totalorder %s15, 0
    %p192 = por %p190, %p191
    %p193 = scmp.ne.s32.totalorder %s185, %s187
    %p194 = scmp.eq.s32.totalorder %s20, 1
    %p195 = por %p193, %p194
    %p196 = scmp.ne.s32.totalorder %s187, %s188
    %p197 = scmp.eq.s32.totalorder %s20, 0
    %p198 = por %p196, %p197
    %p199 = scmp.ne.s32.totalorder %s187, %s188
    %p200 = scmp.eq.s32.totalorder %s21, 1
    %p201 = por %p199, %p200
    %p203 = scmp.ne.s32.totalorder %s188, %s202
    %p204 = scmp.eq.s32.totalorder %s21, 0
    %p205 = por %p203, %p204
    %s207 = sadd.s32 %s206, 1
    %p210 = scmp.eq.s32.totalorder %s15, 1
    %p211 = scmp.ne.s32.totalorder %s206, %s208
    %p212 = scmp.eq.s32.totalorder %s15, 0
    %p213 = por %p211, %p212
    %p214 = scmp.ne.s32.totalorder %s206, %s208
    %p215 = scmp.eq.s32.totalorder %s20, 1
    %p216 = por %p214, %p215
    %p217 = scmp.ne.s32.totalorder %s208, %s209
    %p218 = scmp.eq.s32.totalorder %s20, 0
    %p219 = por %p217, %p218
    %p220 = scmp.ne.s32.totalorder %s208, %s209
    %p221 = scmp.eq.s32.totalorder %s21, 1
    %p222 = por %p220, %p221
    %p224 = scmp.ne.s32.totalorder %s209, %s223
    %p225 = scmp.eq.s32.totalorder %s21, 0
    %p226 = por %p224, %p225
    %s227 = ssub.s32 %s15, %s22
    %p228 = scmp.eq.s32.totalorder %s227, 0
    %s230 = sadd.s32 %s229, 1
    %s231 = scalar_select %p228, %s229, %s230
    %p234 = pneg %p228
    %p235 = scmp.eq.s32.totalorder %s15, 1
    %p236 = por %p234, %p235
    %p237 = scmp.ne.s32.totalorder %s229, %s232
    %p238 = scmp.eq.s32.totalorder %s15, 0
    %p239 = por %p237, %p238
    %p240 = scmp.ne.s32.totalorder %s229, %s232
    %p241 = scmp.eq.s32.totalorder %s20, 1
    %p242 = por %p240, %p241
    %p243 = scmp.ne.s32.totalorder %s232, %s233
    %p244 = scmp.eq.s32.totalorder %s20, 0
    %p245 = por %p243, %p244
    %p246 = scmp.ne.s32.totalorder %s232, %s233
    %p247 = scmp.eq.s32.totalorder %s21, 1
    %p248 = por %p246, %p247
    %p250 = scmp.ne.s32.totalorder %s233, %s249
    %p251 = scmp.eq.s32.totalorder %s21, 0
    %p252 = por %p250, %p251
    %p253 = scmp.le.s32.totalorder 1, %s15
    %p254 = scmp.lt.s32.totalorder %s15, 3
    %p255 = pnand %p253, %p254
    %p256 = pneg %p255
    // Predicated region
    $region9: #{closed_call.83} parent=5 // pred_check
      _
    $region10: #{closed_call.83} parent=5 // pred_check_branch
      %258 = sbr.rel (%p255) target = $region12
    $region11: #{closed_call.83} parent=5 // pred_region
      %s259 = ssub.s32 %s15, 1
      // Predicated region
      $region13: #{closed_call.83} parent=11 // pred_check
        %p260 = pneg %p114
      $region14: #{closed_call.83} parent=11 // pred_check_branch
        %262 = sbr.rel (%p260) target = $region16
      $region15: #{closed_call.83} parent=11 // pred_region
        _
      $region16: #{closed_call.83} parent=11 // pred_fallthru
        _
      // Predicated region
      $region17: #{closed_call.83} parent=11 // pred_check
        %p263 = pneg %p135
      $region18: #{closed_call.83} parent=11 // pred_check_branch
        %265 = sbr.rel (%p263) target = $region20
      $region19: #{closed_call.83} parent=11 // pred_region
        _
      $region20: #{closed_call.83} parent=11 // pred_fallthru
        _
      // Predicated region
      $region21: #{closed_call.83} parent=11 // pred_check
        %p266 = pneg %p156
      $region22: #{closed_call.83} parent=11 // pred_check_branch
        %268 = sbr.rel (%p266) target = $region24
      $region23: #{closed_call.83} parent=11 // pred_region
        _
      $region24: #{closed_call.83} parent=11 // pred_fallthru
        _
      // Predicated region
      $region25: #{closed_call.83} parent=11 // pred_check
        %p269 = pneg %p177
      $region26: #{closed_call.83} parent=11 // pred_check_branch
        %271 = sbr.rel (%p269) target = $region28
      $region27: #{closed_call.83} parent=11 // pred_region
        _
      $region28: #{closed_call.83} parent=11 // pred_fallthru
        _
      // Predicated region
      $region29: #{closed_call.83} parent=11 // pred_check
        %p272 = pneg %p198
      $region30: #{closed_call.83} parent=11 // pred_check_branch
        %274 = sbr.rel (%p272) target = $region32
      $region31: #{closed_call.83} parent=11 // pred_region
        _
      $region32: #{closed_call.83} parent=11 // pred_fallthru
        _
      // Predicated region
      $region33: #{closed_call.83} parent=11 // pred_check
        %p275 = pneg %p219
      $region34: #{closed_call.83} parent=11 // pred_check_branch
        %277 = sbr.rel (%p275) target = $region36
      $region35: #{closed_call.83} parent=11 // pred_region
        _
      $region36: #{closed_call.83} parent=11 // pred_fallthru
        _
    $region12: #{closed_call.83} parent=5 // pred_fallthru
      _
    %p278 = scmp.lt.s32.totalorder %s15, 2
    // Predicated region
    $region37: #{closed_call.83} parent=5 // pred_check
      %p279 = pneg %p278
    $region38: #{closed_call.83} parent=5 // pred_check_branch
      %281 = sbr.rel (%p279) target = $region40
    $region39: #{closed_call.83} parent=5 // pred_region
      // Predicated region
      $region41: #{closed_call.83} parent=39 // pred_check
        %p282 = pneg %p35
      $region42: #{closed_call.83} parent=39 // pred_check_branch
        %284 = sbr.rel (%p282) target = $region44
      $region43: #{closed_call.83} parent=39 // pred_region
        %p285 = scmp.lt.s32.totalorder %s15, 1
        %s286 = scalar_select %p285, %s15, 1
        %s287 = smul.addr %s286, 8
        %s288 = scalar_lea.vmem %s0, %s287
      $region44: #{closed_call.83} parent=39 // pred_fallthru
        _
      // Predicated region
      $region45: #{closed_call.83} parent=39 // pred_check
        %p289 = pneg %p61
      $region46: #{closed_call.83} parent=39 // pred_check_branch
        %291 = sbr.rel (%p289) target = $region48
      $region47: #{closed_call.83} parent=39 // pred_region
        %p292 = scmp.lt.s32.totalorder %s15, 1
        %s293 = scalar_select %p292, %s15, 1
        %s294 = smul.addr %s293, 4
        %s295 = scalar_lea.vmem %s1, %s294
      $region48: #{closed_call.83} parent=39 // pred_fallthru
        _
      // Predicated region
      $region49: #{closed_call.83} parent=39 // pred_check
        %p296 = pneg %p87
      $region50: #{closed_call.83} parent=39 // pred_check_branch
        %298 = sbr.rel (%p296) target = $region52
      $region51: #{closed_call.83} parent=39 // pred_region
        %p299 = scmp.lt.s32.totalorder %s15, 1
        %s300 = scalar_select %p299, %s15, 1
        %s301 = scalar_lea.vmem %s2, %s300
      $region52: #{closed_call.83} parent=39 // pred_fallthru
        _
    $region40: #{closed_call.83} parent=5 // pred_fallthru
      _
    %p302 = scmp.le.s32.totalorder 1, %s15
    %p303 = scmp.lt.s32.totalorder %s15, 3
    %p304 = pnand %p302, %p303
    %p305 = pneg %p304
    // Predicated region
    $region53: #{closed_call.83} parent=5 // pred_check
      _
    $region54: #{closed_call.83} parent=5 // pred_check_branch
      %307 = sbr.rel (%p304) target = $region56
    $region55: #{closed_call.83} parent=5 // pred_region
      %s308 = ssub.s32 %s15, 1
      %p309 = scmp.lt.s32.totalorder %s20, 1
      %s310 = scalar_select %p309, %s20, 1
      %s311 = smul.addr %s310, 8
      %s312 = scalar_lea.vmem %s0, %s311
      %p313 = pneg %p41
      %p314 = pneg %p38
      %p315 = scmp.lt.s32.totalorder %s20, 1
      %s316 = scalar_select %p315, %s20, 1
      %s317 = smul.addr %s316, 4
      %s318 = scalar_lea.vmem %s1, %s317
      %p319 = pneg %p67
      %p320 = pneg %p64
      %p321 = scmp.lt.s32.totalorder %s20, 1
      %s322 = scalar_select %p321, %s20, 1
      %s323 = scalar_lea.vmem %s2, %s322
      %p324 = pneg %p93
      %p325 = pneg %p90
      %p326 = pneg %p114
      %p327 = pneg %p111
      %p328 = pneg %p135
      %p329 = pneg %p132
      %p330 = pneg %p156
      %p331 = pneg %p153
      %p332 = pneg %p177
      %p333 = pneg %p174
      %p334 = pneg %p198
      %p335 = pneg %p195
      %p336 = pneg %p219
      %p337 = pneg %p216
      %p338 = pneg %p245
      %p339 = pneg %p242
      %p340 = scmp.lt.s32.totalorder %s20, 1
      %s341 = scalar_select %p340, %s20, 1
      %s342 = smul.addr %s341, 8
      %s343 = scalar_lea.vmem %s9, %s342
      %p344 = scmp.lt.s32.totalorder %s20, 1
      %s345 = scalar_select %p344, %s20, 1
      %s346 = smul.addr %s345, 8
      %s347 = scalar_lea.vmem %s0, %s346
      %p348 = scmp.lt.s32.totalorder %s20, 1
      %s349 = scalar_select %p348, %s20, 1
      %s350 = smul.addr %s349, 4
      %s351 = scalar_lea.vmem %s1, %s350
      %p352 = scmp.lt.s32.totalorder %s20, 1
      %s353 = scalar_select %p352, %s20, 1
      %s354 = scalar_lea.vmem %s2, %s353
      %p355 = scmp.lt.s32.totalorder %s20, 1
      %s356 = scalar_select %p355, %s20, 1
      %s357 = smul.addr %s356, 8
      %s358 = scalar_lea.vmem %s9, %s357
      %v360 = vld [vmem:[%s347] sm:$0xff]
      %v361 = vpack.c.bf16 %v360, %v360
      %v362 = vld [vmem:[%s3] sm:$0xf]
      %v363 = vld [vmem:[%s3 + $0x4] sm:$0xf]
      %v364 = vld [vmem:[%s3 + $0x8] sm:$0xf]
      %v365 = vld [vmem:[%s3 + $0xc] sm:$0xf]
      %v366 = vld [vmem:[%s4] sm:$0x1]
      %v368 = vlaneseq
      %v369 = vshrl.u32 %v368, 7
      %v370 = vsub.s32 0, %v369
      %v371 = vrot.slane %v366, %v370
      %v377 = vunpack.c.l.b16 %v362
      %v378 = vunpack.c.l.b16 %v363
      %v379 = vunpack.c.l.b16 %v364
      %v380 = vunpack.c.l.b16 %v365
      %v381 = vpack.c.b16 %v378, %v377
      %v382 = vpack.c.b16 %v380, %v379
      %vm385 = vcmask 261120
      %v387 = vsel %vm385, %v361, 0
      %389 = vmatprep.subr.bf16.mxu0 0
      %390 = vmatpush1.bf16.msra.mxu0 %v381
      %391 = vmatprep.subr.bf16.mxu0 0
      %392 = vmatpush1.bf16.msra.mxu0 %v382
      %393 = vmatprep.subr.bf16.mxu0 0
      %394 = vmatpush1.bf16.msra.mxu0 0
      %395 = vmatprep.subr.bf16.mxu0 0
      %396 = vmatpush1.bf16.msra.mxu0 0
      %397 = vmatprep.subr.bf16.mxu0 0
      %398 = vmatpush1.bf16.msra.mxu0 0
      %399 = vmatprep.subr.bf16.mxu0 0
      %400 = vmatpush1.bf16.msra.mxu0 0
      %401 = vmatprep.subr.bf16.mxu0 0
      %402 = vmatpush1.bf16.msra.mxu0 0
      %403 = vmatprep.subr.bf16.mxu0 0
      %404 = vmatpush1.bf16.msra.mxu0 0
      %405 = vmatprep.subr.bf16.mxu0 0
      %406 = vmatpush1.bf16.msra.mxu0 0
      %407 = vmatprep.subr.bf16.mxu0 0
      %408 = vmatpush1.bf16.msra.mxu0 0
      %409 = vmatprep.subr.bf16.mxu0 0
      %410 = vmatpush1.bf16.msra.mxu0 0
      %411 = vmatprep.subr.bf16.mxu0 0
      %412 = vmatpush1.bf16.msra.mxu0 0
      %413 = vmatprep.subr.bf16.mxu0 0
      %414 = vmatpush1.bf16.msra.mxu0 0
      %415 = vmatprep.subr.bf16.mxu0 0
      %416 = vmatpush1.bf16.msra.mxu0 0
      %417 = vmatprep.subr.bf16.mxu0 0
      %418 = vmatpush1.bf16.msra.mxu0 0
      %419 = vmatprep.subr.bf16.mxu0 0
      %420 = vmatpush1.bf16.msra.mxu0 0
      %421 = vmatprep.mubr.bf16.mxu0 0
      %422 = vmatmul.mubr.bf16.gmra.mrb[0].mxu0 %v387
      %v423 = vpop.f32.mrb[0].mxu0
      %v424 = vadd.f32 %v371, %v423
      %v425 = vpop.f32.mrb[0].mxu0
      %v426 = vpop.f32.mrb[0].mxu0
      %v427 = vpop.f32.mrb[0].mxu0
      %428 = vdwg.mxu0
      %v429 = vpack.c.bf16 %v424, %v424
      %v430 = vld [vmem:[%s351] sm:$0xf]
      %v431 = vld [vmem:[%s354] sm:$0x1]
      %v432 = vld [vmem:[%s5] sm:$0xf]
      %v433 = vld [vmem:[%s5 + $0x4] sm:$0xf]
      %v434 = vld [vmem:[%s5 + $0x8] sm:$0xf]
      %v435 = vld [vmem:[%s5 + $0xc] sm:$0xf]
      %v437 = vlaneseq
      %v438 = vshrl.u32 %v437, 7
      %v439 = vsub.s32 0, %v438
      %v440 = vrot.slane %v431, %v439
      %vm442 = vcmask 130048
      %v444 = vsel %vm442, %v429, 0
      %v447 = vsel %vm442, %v430, 0
      %449 = vmatprep.subr.bf16.mxu0 0
      %450 = vmatpush1.bf16.xpose.msra.mxu0 %v447
      %451 = vmatprep.subr.bf16.mxu0 0
      %452 = vmatpush1.bf16.xpose.msra.mxu0 0
      %453 = vmatprep.subr.bf16.mxu0 0
      %454 = vmatpush1.bf16.xpose.msra.mxu0 0
      %455 = vmatprep.subr.bf16.mxu0 0
      %456 = vmatpush1.bf16.xpose.msra.mxu0 0
      %457 = vmatprep.subr.bf16.mxu0 0
      %458 = vmatpush1.bf16.xpose.msra.mxu0 0
      %459 = vmatprep.subr.bf16.mxu0 0
      %460 = vmatpush1.bf16.xpose.msra.mxu0 0
      %461 = vmatprep.subr.bf16.mxu0 0
      %462 = vmatpush1.bf16.xpose.msra.mxu0 0
      %463 = vmatprep.subr.bf16.mxu0 0
      %464 = vmatpush1.bf16.xpose.msra.mxu0 0
      %465 = vmatprep.subr.bf16.mxu0 0
      %466 = vmatpush1.bf16.xpose.msra.mxu0 0
      %467 = vmatprep.subr.bf16.mxu0 0
      %468 = vmatpush1.bf16.xpose.msra.mxu0 0
      %469 = vmatprep.subr.bf16.mxu0 0
      %470 = vmatpush1.bf16.xpose.msra.mxu0 0
      %471 = vmatprep.subr.bf16.mxu0 0
      %472 = vmatpush1.bf16.xpose.msra.mxu0 0
      %473 = vmatprep.subr.bf16.mxu0 0
      %474 = vmatpush1.bf16.xpose.msra.mxu0 0
      %475 = vmatprep.subr.bf16.mxu0 0
      %476 = vmatpush1.bf16.xpose.msra.mxu0 0
      %477 = vmatprep.subr.bf16.mxu0 0
      %478 = vmatpush1.bf16.xpose.msra.mxu0 0
      %479 = vmatprep.subr.bf16.mxu0 0
      %480 = vmatpush1.bf16.xpose.msra.mxu0 0
      %481 = vmatprep.mubr.bf16.mxu0 0
      %482 = vmatmul.mubr.bf16.gmra.mrb[0].mxu0 %v444
      %v483 = vpop.f32.mrb[0].mxu0
      %v484 = vadd.f32 0.0, %v483
      %v485 = vpop.f32.mrb[0].mxu0
      %v486 = vpop.f32.mrb[0].mxu0
      %v487 = vpop.f32.mrb[0].mxu0
      %488 = vdwg.mxu0
      %v489 = vmul.f32 %v484, 0.25
      %v490 = vadd.f32 %v489, %v440
      %vm491 = vcmask 64512
      %v492 = vsel %vm491, %v490, -inf
      %493 = vmax.xlane.f32.xlu0 %v492
      %v494 = vpop.xlane.xlu0 %493
      %v495 = vsub.f32 %v490, %v494
      %v496 = vmul.f32 %v495, 1.442695
      %v497 = vpow.pop %v496
      %v498 = vsel %vm491, %v497, 0.0
      %499 = vadd.xlane.f32.xlu0 %v498
      %v500 = vpop.xlane.xlu0 %499
      %v501 = vrcp.pop %v500
      %v502 = vmul.f32 %v497, %v501
      %v503 = vpack.c.bf16 %v502, %v502
      %v505 = vunpack.c.l.b16 %v430
      %v506 = vpack.c.b16 %v505, %v505
      %507 = vrot.lane.b32.xlu0 %v506, 96
      %v508 = vpop.permute.xlu0 %507
      %v510 = vsel %vm491, %v503, 0
      %vm512 = vcmask 1043456
      %v514 = vsel %vm512, %v508, 0
      %516 = vmatprep.subr.bf16.mxu0 0
      %517 = vmatpush1.bf16.msra.mxu0 %v514
      %518 = vmatprep.subr.bf16.mxu0 0
      %519 = vmatpush1.bf16.msra.mxu0 0
      %520 = vmatprep.subr.bf16.mxu0 0
      %521 = vmatpush1.bf16.msra.mxu0 0
      %522 = vmatprep.subr.bf16.mxu0 0
      %523 = vmatpush1.bf16.msra.mxu0 0
      %524 = vmatprep.subr.bf16.mxu0 0
      %525 = vmatpush1.bf16.msra.mxu0 0
      %526 = vmatprep.subr.bf16.mxu0 0
      %527 = vmatpush1.bf16.msra.mxu0 0
      %528 = vmatprep.subr.bf16.mxu0 0
      %529 = vmatpush1.bf16.msra.mxu0 0
      %530 = vmatprep.subr.bf16.mxu0 0
      %531 = vmatpush1.bf16.msra.mxu0 0
      %532 = vmatprep.subr.bf16.mxu0 0
      %533 = vmatpush1.bf16.msra.mxu0 0
      %534 = vmatprep.subr.bf16.mxu0 0
      %535 = vmatpush1.bf16.msra.mxu0 0
      %536 = vmatprep.subr.bf16.mxu0 0
      %537 = vmatpush1.bf16.msra.mxu0 0
      %538 = vmatprep.subr.bf16.mxu0 0
      %539 = vmatpush1.bf16.msra.mxu0 0
      %540 = vmatprep.subr.bf16.mxu0 0
      %541 = vmatpush1.bf16.msra.mxu0 0
      %542 = vmatprep.subr.bf16.mxu0 0
      %543 = vmatpush1.bf16.msra.mxu0 0
      %544 = vmatprep.subr.bf16.mxu0 0
      %545 = vmatpush1.bf16.msra.mxu0 0
      %546 = vmatprep.subr.bf16.mxu0 0
      %547 = vmatpush1.bf16.msra.mxu0 0
      %548 = vmatprep.mubr.bf16.mxu0 0
      %549 = vmatmul.mubr.bf16.gmra.mrb[0].mxu0 %v510
      %v550 = vpop.f32.mrb[0].mxu0
      %v551 = vadd.f32 0.0, %v550
      %v552 = vpop.f32.mrb[0].mxu0
      %v553 = vpop.f32.mrb[0].mxu0
      %v554 = vpop.f32.mrb[0].mxu0
      %555 = vdwg.mxu0
      %557 = vrot.lane.b32.xlu0 %v429, 112
      %v558 = vpop.permute.xlu0 %557
      %559 = vrot.lane.b32.xlu0 %v506, 112
      %v560 = vpop.permute.xlu0 %559
      %v562 = vsel %vm442, %v558, 0
      %v565 = vsel %vm442, %v560, 0
      %567 = vmatprep.subr.bf16.mxu0 0
      %568 = vmatpush1.bf16.xpose.msra.mxu0 %v565
      %569 = vmatprep.subr.bf16.mxu0 0
      %570 = vmatpush1.bf16.xpose.msra.mxu0 0
      %571 = vmatprep.subr.bf16.mxu0 0
      %572 = vmatpush1.bf16.xpose.msra.mxu0 0
      %573 = vmatprep.subr.bf16.mxu0 0
      %574 = vmatpush1.bf16.xpose.msra.mxu0 0
      %575 = vmatprep.subr.bf16.mxu0 0
      %576 = vmatpush1.bf16.xpose.msra.mxu0 0
      %577 = vmatprep.subr.bf16.mxu0 0
      %578 = vmatpush1.bf16.xpose.msra.mxu0 0
      %579 = vmatprep.subr.bf16.mxu0 0
      %580 = vmatpush1.bf16.xpose.msra.mxu0 0
      %581 = vmatprep.subr.bf16.mxu0 0
      %582 = vmatpush1.bf16.xpose.msra.mxu0 0
      %583 = vmatprep.subr.bf16.mxu0 0
      %584 = vmatpush1.bf16.xpose.msra.mxu0 0
      %585 = vmatprep.subr.bf16.mxu0 0
      %586 = vmatpush1.bf16.xpose.msra.mxu0 0
      %587 = vmatprep.subr.bf16.mxu0 0
      %588 = vmatpush1.bf16.xpose.msra.mxu0 0
      %589 = vmatprep.subr.bf16.mxu0 0
      %590 = vmatpush1.bf16.xpose.msra.mxu0 0
      %591 = vmatprep.subr.bf16.mxu0 0
      %592 = vmatpush1.bf16.xpose.msra.mxu0 0
      %593 = vmatprep.subr.bf16.mxu0 0
      %594 = vmatpush1.bf16.xpose.msra.mxu0 0
      %595 = vmatprep.subr.bf16.mxu0 0
      %596 = vmatpush1.bf16.xpose.msra.mxu0 0
      %597 = vmatprep.subr.bf16.mxu0 0
      %598 = vmatpush1.bf16.xpose.msra.mxu0 0
      %599 = vmatprep.mubr.bf16.mxu0 0
      %600 = vmatmul.mubr.bf16.gmra.mrb[0].mxu0 %v562
      %v601 = vpop.f32.mrb[0].mxu0
      %v602 = vadd.f32 0.0, %v601
      %v603 = vpop.f32.mrb[0].mxu0
      %v604 = vpop.f32.mrb[0].mxu0
      %v605 = vpop.f32.mrb[0].mxu0
      %606 = vdwg.mxu0
      %v607 = vmul.f32 %v602, 0.25
      %v608 = vadd.f32 %v607, %v440
      %v609 = vsel %vm491, %v608, -inf
      %610 = vmax.xlane.f32.xlu0 %v609
      %v611 = vpop.xlane.xlu0 %610
      %v612 = vsub.f32 %v608, %v611
      %v613 = vmul.f32 %v612, 1.442695
      %v614 = vpow.pop %v613
      %v615 = vsel %vm491, %v614, 0.0
      %616 = vadd.xlane.f32.xlu0 %v615
      %v617 = vpop.xlane.xlu0 %616
      %v618 = vrcp.pop %v617
      %v619 = vmul.f32 %v614, %v618
      %v620 = vpack.c.bf16 %v619, %v619
      %621 = vrot.lane.b32.xlu0 %v506, 80
      %v622 = vpop.permute.xlu0 %621
      %v624 = vsel %vm491, %v620, 0
      %v627 = vsel %vm512, %v622, 0
      %629 = vmatprep.subr.bf16.mxu0 0
      %630 = vmatpush1.bf16.msra.mxu0 %v627
      %631 = vmatprep.subr.bf16.mxu0 0
      %632 = vmatpush1.bf16.msra.mxu0 0
      %633 = vmatprep.subr.bf16.mxu0 0
      %634 = vmatpush1.bf16.msra.mxu0 0
      %635 = vmatprep.subr.bf16.mxu0 0
      %636 = vmatpush1.bf16.msra.mxu0 0
      %637 = vmatprep.subr.bf16.mxu0 0
      %638 = vmatpush1.bf16.msra.mxu0 0
      %639 = vmatprep.subr.bf16.mxu0 0
      %640 = vmatpush1.bf16.msra.mxu0 0
      %641 = vmatprep.subr.bf16.mxu0 0
      %642 = vmatpush1.bf16.msra.mxu0 0
      %643 = vmatprep.subr.bf16.mxu0 0
      %644 = vmatpush1.bf16.msra.mxu0 0
      %645 = vmatprep.subr.bf16.mxu0 0
      %646 = vmatpush1.bf16.msra.mxu0 0
      %647 = vmatprep.subr.bf16.mxu0 0
      %648 = vmatpush1.bf16.msra.mxu0 0
      %649 = vmatprep.subr.bf16.mxu0 0
      %650 = vmatpush1.bf16.msra.mxu0 0
      %651 = vmatprep.subr.bf16.mxu0 0
      %652 = vmatpush1.bf16.msra.mxu0 0
      %653 = vmatprep.subr.bf16.mxu0 0
      %654 = vmatpush1.bf16.msra.mxu0 0
      %655 = vmatprep.subr.bf16.mxu0 0
      %656 = vmatpush1.bf16.msra.mxu0 0
      %657 = vmatprep.subr.bf16.mxu0 0
      %658 = vmatpush1.bf16.msra.mxu0 0
      %659 = vmatprep.subr.bf16.mxu0 0
      %660 = vmatpush1.bf16.msra.mxu0 0
      %661 = vmatprep.mubr.bf16.mxu0 0
      %662 = vmatmul.mubr.bf16.gmra.mrb[0].mxu0 %v624
      %v663 = vpop.f32.mrb[0].mxu0
      %v664 = vadd.f32 0.0, %v663
      %v665 = vpop.f32.mrb[0].mxu0
      %v666 = vpop.f32.mrb[0].mxu0
      %v667 = vpop.f32.mrb[0].mxu0
      %668 = vdwg.mxu0
      %670 = vrot.lane.b32.xlu0 %v664, 16
      %v671 = vpop.permute.xlu0 %670
      %v673 = vsel %vm442, %v551, %v671
      %v674 = vpack.c.bf16 %v673, %v673
      %v679 = vunpack.c.l.b16 %v432
      %v680 = vunpack.c.l.b16 %v433
      %v681 = vunpack.c.l.b16 %v434
      %v682 = vunpack.c.l.b16 %v435
      %v683 = vpack.c.b16 %v680, %v679
      %v684 = vpack.c.b16 %v682, %v681
      %v688 = vsel %vm385, %v674, 0
      %690 = vmatprep.subr.bf16.mxu0 0
      %691 = vmatpush1.bf16.msra.mxu0 %v683
      %692 = vmatprep.subr.bf16.mxu0 0
      %693 = vmatpush1.bf16.msra.mxu0 %v684
      %694 = vmatprep.subr.bf16.mxu0 0
      %695 = vmatpush1.bf16.msra.mxu0 0
      %696 = vmatprep.subr.bf16.mxu0 0
      %697 = vmatpush1.bf16.msra.mxu0 0
      %698 = vmatprep.subr.bf16.mxu0 0
      %699 = vmatpush1.bf16.msra.mxu0 0
      %700 = vmatprep.subr.bf16.mxu0 0
      %701 = vmatpush1.bf16.msra.mxu0 0
      %702 = vmatprep.subr.bf16.mxu0 0
      %703 = vmatpush1.bf16.msra.mxu0 0
      %704 = vmatprep.subr.bf16.mxu0 0
      %705 = vmatpush1.bf16.msra.mxu0 0
      %706 = vmatprep.subr.bf16.mxu0 0
      %707 = vmatpush1.bf16.msra.mxu0 0
      %708 = vmatprep.subr.bf16.mxu0 0
      %709 = vmatpush1.bf16.msra.mxu0 0
      %710 = vmatprep.subr.bf16.mxu0 0
      %711 = vmatpush1.bf16.msra.mxu0 0
      %712 = vmatprep.subr.bf16.mxu0 0
      %713 = vmatpush1.bf16.msra.mxu0 0
      %714 = vmatprep.subr.bf16.mxu0 0
      %715 = vmatpush1.bf16.msra.mxu0 0
      %716 = vmatprep.subr.bf16.mxu0 0
      %717 = vmatpush1.bf16.msra.mxu0 0
      %718 = vmatprep.subr.bf16.mxu0 0
      %719 = vmatpush1.bf16.msra.mxu0 0
      %720 = vmatprep.subr.bf16.mxu0 0
      %721 = vmatpush1.bf16.msra.mxu0 0
      %722 = vmatprep.mubr.bf16.mxu0 0
      %723 = vmatmul.mubr.bf16.gmra.mrb[0].mxu0 %v688
      %v724 = vpop.f32.mrb[0].mxu0
      %v725 = vadd.f32 0.0, %v724
      %v726 = vpop.f32.mrb[0].mxu0
      %v727 = vpop.f32.mrb[0].mxu0
      %v728 = vpop.f32.mrb[0].mxu0
      %729 = vdwg.mxu0
      %v730 = vadd.f32 %v360, %v725
      %v731 = vld [vmem:[%s6] sm:$0x1]
      %v733 = vlaneseq
      %v734 = vshrl.u32 %v733, 7
      %v735 = vsub.s32 0, %v734
      %v736 = vrot.slane %v731, %v735
      %v738 = vadd.f32 %v730, %v736
      %v739 = vsel %vm385, %v738, 0.0
      %740 = vadd.xlane.f32.xlu0 %v739
      %v741 = vpop.xlane.xlu0 %740
      %v742 = vrcp.pop 32.0
      %v743 = vmul.f32 %v741, %v742
      %v744 = vsub.f32 %v738, %v743
      %v745 = vmul.f32 %v744, %v744
      %v746 = vsel %vm385, %v745, 0.0
      %747 = vadd.xlane.f32.xlu0 %v746
      %v748 = vpop.xlane.xlu0 %747
      %v749 = vmul.f32 %v748, %v742
      %v750 = vadd.f32 %v749, 1e-05
      %v751 = vrsqrt.pop %v750
      %v752 = vmul.f32 %v744, %v751
      %v753 = vld [vmem:[%s7] sm:$0x1]
      %v755 = vlaneseq
      %v756 = vshrl.u32 %v755, 7
      %v757 = vsub.s32 0, %v756
      %v758 = vrot.slane %v753, %v757
      %v760 = vmul.f32 %v752, %v758
      %v761 = vld [vmem:[%s8] sm:$0x1]
      %v763 = vlaneseq
      %v764 = vshrl.u32 %v763, 7
      %v765 = vsub.s32 0, %v764
      %v766 = vrot.slane %v761, %v765
      %v768 = vadd.f32 %v760, %v766
      %769 = vst.msk [vmem:[%s358] sm:$0xff] %vm385, %v768
      %p770 = scmp.lt.s32.totalorder %s20, 1
      %s771 = scalar_select %p770, %s20, 1
      %s772 = smul.addr %s771, 8
      %s773 = scalar_lea.vmem %s9, %s772
      // Predicated region
      $region57: #{closed_call.83} parent=55 // pred_check
        %p774 = pneg %p242
      $region58: #{closed_call.83} parent=55 // pred_check_branch
        %776 = sbr.rel (%p774) target = $region60
      $region59: #{closed_call.83} parent=55 // pred_region
        _
      $region60: #{closed_call.83} parent=55 // pred_fallthru
        _
    $region56: #{closed_call.83} parent=5 // pred_fallthru
      _
    %p777 = scmp.le.s32.totalorder 2, %s15
    // Predicated region
    $region61: #{closed_call.83} parent=5 // pred_check
      %p778 = pneg %p777
    $region62: #{closed_call.83} parent=5 // pred_check_branch
      %780 = sbr.rel (%p778) target = $region64
    $region63: #{closed_call.83} parent=5 // pred_region
      %s781 = ssub.s32 %s15, 2
      // Predicated region
      $region65: #{closed_call.83} parent=63 // pred_check
        %p782 = pneg %p248
      $region66: #{closed_call.83} parent=63 // pred_check_branch
        %784 = sbr.rel (%p782) target = $region68
      $region67: #{closed_call.83} parent=63 // pred_region
        %p785 = scmp.lt.s32.totalorder %s21, 1
        %s786 = scalar_select %p785, %s21, 1
        %s787 = smul.addr %s786, 8
        %s788 = scalar_lea.vmem %s9, %s787
      $region68: #{closed_call.83} parent=63 // pred_fallthru
        _
    $region64: #{closed_call.83} parent=5 // pred_fallthru
      _
  $region6: #{closed_call.83} parent=0 // loop_footer
    %s19 = sadd.s32 1, %s15
  $region7: #{closed_call.83} parent=0 // loop_footer_branch
    %14 = sbr.rel target = $region3
  $region8: #{closed_call.83} parent=0 // loop_exit
    _

// kernel: closed_call.88
$region0: #{closed_call.88}
  #allocation0 [shape = 'u32[]', space=smem, size = 0x4, offset = 0x4, fixed_abs, tag = 'smem constant byte address 0x4 - core index']
  #allocation1 [shape = 'u32[144,128]{1,0:T(1,128)}', space=vmem, size = 0x12000, scoped, tag = 'internal scratch']
  %s0 = inlined_call_operand.vmem [shape: bf16[16,32], index: 0, kind: input, shape index: {}]
  %s1 = inlined_call_operand.vmem [shape: bf16[32,16], index: 1, kind: input, shape index: {}]
  %s2 = inlined_call_operand.vmem [shape: f32[1,16], index: 2, kind: input, shape index: {}]
  %s3 = inlined_call_operand.vmem [shape: f32[16,16], index: 3, kind: output, shape index: {}]
  %s4 = sld [smem:[#allocation0]]
  $region22: #{closed_call.88} parent=0
    _
  %s6 = ssub.s32 1, %s4
  %s7 = scalar_select 0, %s6, %s4
  // Predicated region
  $region2: #{closed_call.88} parent=0 // pred_check
    _
  $region3: #{closed_call.88} parent=0 // pred_check_branch
    %9 = sbr.rel (0) target = $region5
  $region4: #{closed_call.88} parent=0 // pred_region
    _
  $region5: #{closed_call.88} parent=0 // pred_fallthru
    _
  // Predicated region
  $region6: #{closed_call.88} parent=0 // pred_check
    _
  $region7: #{closed_call.88} parent=0 // pred_check_branch
    %11 = sbr.rel (0) target = $region9
  $region8: #{closed_call.88} parent=0 // pred_region
    _
  $region9: #{closed_call.88} parent=0 // pred_fallthru
    _
  // Predicated region
  $region10: #{closed_call.88} parent=0 // pred_check
    _
  $region11: #{closed_call.88} parent=0 // pred_check_branch
    %13 = sbr.rel (0) target = $region13
  $region12: #{closed_call.88} parent=0 // pred_region
    _
  $region13: #{closed_call.88} parent=0 // pred_fallthru
    _
  %v15 = vld [vmem:[%s0] sm:$0xf]
  %v16 = vld [vmem:[%s0 + $0x4] sm:$0xf]
  %v17 = vld [vmem:[%s1] sm:$0xf]
  %v18 = vld [vmem:[%s1 + $0x4] sm:$0xf]
  %v19 = vld [vmem:[%s1 + $0x8] sm:$0xf]
  %v20 = vld [vmem:[%s1 + $0xc] sm:$0xf]
  %v21 = vld [vmem:[%s2] sm:$0x1]
  %v23 = vlaneseq
  %v24 = vshrl.u32 %v23, 7
  %v25 = vsub.s32 0, %v24
  %v26 = vrot.slane %v21, %v25
  %v30 = vunpack.c.l.b16 %v15
  %v31 = vunpack.c.l.b16 %v16
  %v32 = vpack.c.b16 %v31, %v30
  %v37 = vunpack.c.l.b16 %v17
  %v38 = vunpack.c.l.b16 %v18
  %v39 = vunpack.c.l.b16 %v19
  %v40 = vunpack.c.l.b16 %v20
  %v41 = vpack.c.b16 %v38, %v37
  %v42 = vpack.c.b16 %v40, %v39
  %vm45 = vcmask 261120
  %v47 = vsel %vm45, %v32, 0
  %49 = vmatprep.subr.bf16.mxu0 0
  %50 = vmatpush1.bf16.msra.mxu0 %v41
  %51 = vmatprep.subr.bf16.mxu0 0
  %52 = vmatpush1.bf16.msra.mxu0 %v42
  %53 = vmatprep.subr.bf16.mxu0 0
  %54 = vmatpush1.bf16.msra.mxu0 0
  %55 = vmatprep.subr.bf16.mxu0 0
  %56 = vmatpush1.bf16.msra.mxu0 0
  %57 = vmatprep.subr.bf16.mxu0 0
  %58 = vmatpush1.bf16.msra.mxu0 0
  %59 = vmatprep.subr.bf16.mxu0 0
  %60 = vmatpush1.bf16.msra.mxu0 0
  %61 = vmatprep.subr.bf16.mxu0 0
  %62 = vmatpush1.bf16.msra.mxu0 0
  %63 = vmatprep.subr.bf16.mxu0 0
  %64 = vmatpush1.bf16.msra.mxu0 0
  %65 = vmatprep.subr.bf16.mxu0 0
  %66 = vmatpush1.bf16.msra.mxu0 0
  %67 = vmatprep.subr.bf16.mxu0 0
  %68 = vmatpush1.bf16.msra.mxu0 0
  %69 = vmatprep.subr.bf16.mxu0 0
  %70 = vmatpush1.bf16.msra.mxu0 0
  %71 = vmatprep.subr.bf16.mxu0 0
  %72 = vmatpush1.bf16.msra.mxu0 0
  %73 = vmatprep.subr.bf16.mxu0 0
  %74 = vmatpush1.bf16.msra.mxu0 0
  %75 = vmatprep.subr.bf16.mxu0 0
  %76 = vmatpush1.bf16.msra.mxu0 0
  %77 = vmatprep.subr.bf16.mxu0 0
  %78 = vmatpush1.bf16.msra.mxu0 0
  %79 = vmatprep.subr.bf16.mxu0 0
  %80 = vmatpush1.bf16.msra.mxu0 0
  %81 = vmatprep.mubr.bf16.mxu0 0
  %82 = vmatmul.mubr.bf16.gmra.mrb[0].mxu0 %v47
  %v83 = vpop.f32.mrb[0].mxu0
  %v84 = vadd.f32 %v26, %v83
  %v85 = vpop.f32.mrb[0].mxu0
  %v86 = vpop.f32.mrb[0].mxu0
  %v87 = vadd.f32 %v26, %v86
  %v88 = vpop.f32.mrb[0].mxu0
  %89 = vdwg.mxu0
  %vm90 = vcmask 130048
  %91 = vst.msk [vmem:[%s3] sm:$0xff] %vm90, %v84
  %92 = vst.msk [vmem:[%s3 + $0x8] sm:$0xff] %vm90, %v87
  // Predicated region
  $region14: #{closed_call.88} parent=0 // pred_check
    _
  $region15: #{closed_call.88} parent=0 // pred_check_branch
    %94 = sbr.rel (0) target = $region17
  $region16: #{closed_call.88} parent=0 // pred_region
    _
  $region17: #{closed_call.88} parent=0 // pred_fallthru
    _
  // Predicated region
  $region18: #{closed_call.88} parent=0 // pred_check
    _
  $region19: #{closed_call.88} parent=0 // pred_check_branch
    %96 = sbr.rel (0) target = $region21
  $region20: #{closed_call.88} parent=0 // pred_region
    _
  $region21: #{closed_call.88} parent=0 // pred_fallthru
    _

</llo_original>
